<compile_context>
chip_gen: v7x
topology: tpu7x:2x2x1
jax: 0.10.0
libtpu: 0.0.40
codegen_flags: <defaults>
</compile_context>

<pallas_src>
import functools

import jax
import jax.numpy as jnp
from jax import lax
from jax.experimental import pallas as pl
from jax.experimental.pallas import tpu as pltpu


# ----------------------------------------------------------------------------
# Fused Pallas kernel: RNN1 + RNN2 + dense stack + output head
# ----------------------------------------------------------------------------
def dqn_fused_kernel(*refs, num_dense):
    """Inputs (all VMEM, full-array):
        x_tm   : (T, B, I) f32   time-major input sequence
        h1, h2 : (1, B, H) f32   initial hidden states
        wih1   : (I, H)  bf16    RNN1 input->hidden weight (pre-transposed)
        whh1   : (H, H)  bf16    RNN1 hidden->hidden weight
        b1     : (1, H)  f32     RNN1 combined bias (b_ih + b_hh)
        wih2, whh2, b2           RNN2 weights/bias (bf16/bf16/f32)
        [w_d, b_d] * num_dense   dense-layer weights (bf16) / biases (f32)
        wout, bout               output-layer weight (bf16) / bias (f32)
    Output:
        out    : (B, P) f32 packed lane-dense slab = [h1 | h2 | q | zero-pad],
                 P = 2H + A rounded up to a multiple of 128 lanes.
    Scratch:
        xp1    : (T, B, H) f32   hoisted RNN1 input projection
    """
    n_in = 11 + 2 * num_dense
    (x_ref, h1_ref, h2_ref,
     wih1_ref, whh1_ref, b1_ref,
     wih2_ref, whh2_ref, b2_ref) = refs[:9]
    dense_refs = refs[9:9 + 2 * num_dense]
    wout_ref, bout_ref = refs[9 + 2 * num_dense:n_in]
    out_ref = refs[n_in]
    xp1_ref = refs[n_in + 1]

    T, B, I = x_ref.shape
    H = h1_ref.shape[-1]
    A = bout_ref.shape[-1]
    P = out_ref.shape[-1]
    bf16 = jnp.bfloat16

    # --- RNN1 input projection hoisted out of the recurrence ----------------
    # One (T*B, I) @ (I, H) bf16 MXU push with f32 accumulation; result parked
    # in VMEM scratch so the unrolled time loop reads one (B, H) tile per step
    # instead of carrying the whole (T, B, H) slab in vregs.
    xp1_ref[...] = (
        jnp.dot(x_ref[...].reshape(T * B, I).astype(bf16), wih1_ref[...],
                preferred_element_type=jnp.float32)
        + b1_ref[...]).reshape(T, B, H)

    whh1 = whh1_ref[...]
    wih2 = wih2_ref[...]
    whh2 = whh2_ref[...]
    b2 = b2_ref[...]

    # --- fused two-layer recurrence ------------------------------------------
    # Hidden states carried as f32 values (vreg-resident); bf16 only at the
    # MXU inputs; tanh/adds stay f32 (no bf16 EUP/VALU on v5e, no drift).
    h1 = h1_ref[0]
    h2 = h2_ref[0]
    for t in range(T):                      # static trip count -> fully unrolled
        h1 = jnp.tanh(
            xp1_ref[t]
            + jnp.dot(h1.astype(bf16), whh1, preferred_element_type=jnp.float32))
        h2 = jnp.tanh(
            jnp.dot(h1.astype(bf16), wih2, preferred_element_type=jnp.float32)
            + jnp.dot(h2.astype(bf16), whh2, preferred_element_type=jnp.float32)
            + b2)
        # dropout1 / dropout2: identity (eval mode)

    # --- fused MLP head (dense stack + output), weights VMEM-resident -------
    feat = h2
    for i in range(num_dense):
        w = dense_refs[2 * i][...]
        b = dense_refs[2 * i + 1][...]
        feat = jnp.maximum(
            jnp.dot(feat.astype(bf16), w, preferred_element_type=jnp.float32) + b,
            0.0)
        # per-layer dropout: identity (eval mode)
    q = (jnp.dot(feat.astype(bf16), wout_ref[...],
                 preferred_element_type=jnp.float32)
         + bout_ref[...])

    # --- lane-dense packed output: one unmasked full-width store ------------
    pieces = [h1, h2, q]
    pad = P - (2 * H + A)
    if pad:
        pieces.append(jnp.zeros((B, pad), jnp.float32))
    out_ref[...] = jnp.concatenate(pieces, axis=-1)


# ----------------------------------------------------------------------------
# Wrapper around the single pallas_call
# ----------------------------------------------------------------------------
_VMEM = pl.BlockSpec(memory_space=pltpu.MemorySpace.VMEM)


def dqn_forward(params, x, hidden_state1, hidden_state2):
    """x: (B, T, input_size) batch-first f32; hidden_state*: (1, B, H) f32.

    Returns (q (B, num_actions), hidden_state1 (1,B,H), hidden_state2 (1,B,H)).
    """
    B, T, I = x.shape
    H = hidden_state1.shape[-1]
    x_tm = jnp.transpose(x, (1, 0, 2))        # (T, B, I) — tiny glue copy

    dense = params["dense"]
    num_dense = len(dense)
    out_p = params["output"]
    A = out_p["w_t"].shape[1]
    P = 128 * pl.cdiv(2 * H + A, 128)         # lane-dense packed output width

    inputs = [x_tm, hidden_state1, hidden_state2,
              params["rnn1"]["w_ih_t"], params["rnn1"]["w_hh_t"],
              params["rnn1"]["b"],
              params["rnn2"]["w_ih_t"], params["rnn2"]["w_hh_t"],
              params["rnn2"]["b"]]
    for lp in dense:
        inputs += [lp["w_t"], lp["b"]]
    inputs += [out_p["w_t"], out_p["b"]]

    # Advisory cost hint for XLA scheduling around the fused custom call.
    flops = 2 * B * T * I * H + T * 3 * 2 * B * H * H
    fin = H
    for lp in dense:
        fout = lp["w_t"].shape[1]
        flops += 2 * B * fin * fout
        fin = fout
    flops += 2 * B * fin * A
    bytes_accessed = sum(int(a.size) * a.dtype.itemsize for a in inputs)
    bytes_accessed += 4 * B * P
    cost = pl.CostEstimate(flops=int(flops),
                           transcendentals=int(2 * T * B * H),
                           bytes_accessed=int(bytes_accessed))

    packed = pl.pallas_call(
        functools.partial(dqn_fused_kernel, num_dense=num_dense),
        out_shape=jax.ShapeDtypeStruct((B, P), jnp.float32),
        in_specs=[_VMEM] * len(inputs),
        out_specs=_VMEM,
        scratch_shapes=[pltpu.VMEM((T, B, H), jnp.float32)],
        cost_estimate=cost,
    )(*inputs)

    # Unpack the lane-dense slab (static slices; trivial XLA glue).
    h1_out = packed[:, :H][None, :, :]
    h2_out = packed[:, H:2 * H][None, :, :]
    q = packed[:, 2 * H:2 * H + A]
    return q, h1_out, h2_out


# ----------------------------------------------------------------------------
# Parameter construction (deterministic, PyTorch-like uniform init).
# MXU weight matrices are stored pre-transposed and pre-cast to bf16;
# biases stay f32 (added on the VPU after the f32-accumulated dot).
# ----------------------------------------------------------------------------
def _uniform(key, shape, bound):
    return jax.random.uniform(key, shape, jnp.float32, -bound, bound)


def init_dqn_params(key, input_size, hidden_size, num_actions,
                    dense_layers, dense_size):
    params = {}
    keys = iter(jax.random.split(key, 64))

    def rnn_params(in_dim, h_dim):
        bound = 1.0 / float(h_dim) ** 0.5
        w_ih = _uniform(next(keys), (h_dim, in_dim), bound)    # torch layout (H, I)
        w_hh = _uniform(next(keys), (h_dim, h_dim), bound)
        b_ih = _uniform(next(keys), (h_dim,), bound)
        b_hh = _uniform(next(keys), (h_dim,), bound)
        return {
            "w_ih_t": w_ih.T.astype(jnp.bfloat16),             # (I, H) bf16
            "w_hh_t": w_hh.T.astype(jnp.bfloat16),             # (H, H) bf16
            # b_ih + b_hh combined (fp summation order differs from torch at ulp level)
            "b": (b_ih + b_hh).reshape(1, h_dim),
        }

    params["rnn1"] = rnn_params(input_size, hidden_size)
    params["rnn2"] = rnn_params(hidden_size, hidden_size)

    def linear_params(in_dim, out_dim):
        bound = 1.0 / float(in_dim) ** 0.5
        w = _uniform(next(keys), (out_dim, in_dim), bound)     # torch layout
        b = _uniform(next(keys), (out_dim,), bound)
        return {"w_t": w.T.astype(jnp.bfloat16), "b": b.reshape(1, out_dim)}

    dense = []
    in_dim = hidden_size
    for i in range(dense_layers):
        out_dim = dense_size if i == 0 else dense_size // (2 ** i)
        dense.append(linear_params(in_dim, out_dim))
        in_dim = out_dim
    params["dense"] = dense
    params["output"] = linear_params(in_dim, num_actions)
    return params


# ----------------------------------------------------------------------------
# Pure-JAX reference (for correctness check).  Uses the same numerics as the
# kernel: bf16 MXU inputs, f32 accumulation, f32 elementwise/carries — so the
# comparison checks kernel structure, not dtype-choice drift.
# ----------------------------------------------------------------------------
def dqn_reference(params, x, h1_0, h2_0):
    bf = lambda a: a.astype(jnp.bfloat16)

    def rnn(x_seq, h0, p):
        def step(h, x_t):
            h_new = jnp.tanh(
                jnp.dot(bf(x_t), p["w_ih_t"], preferred_element_type=jnp.float32)
                + jnp.dot(bf(h), p["w_hh_t"], preferred_element_type=jnp.float32)
                + p["b"])
            return h_new, h_new
        h_last, ys = lax.scan(step, h0, jnp.transpose(x_seq, (1, 0, 2)))
        return jnp.transpose(ys, (1, 0, 2)), h_last

    y1, h1 = rnn(x, h1_0[0], params["rnn1"])
    _, h2 = rnn(y1, h2_0[0], params["rnn2"])
    feat = h2
    for lp in params["dense"]:
        feat = jax.nn.relu(
            jnp.dot(bf(feat), lp["w_t"], preferred_element_type=jnp.float32)
            + lp["b"])
    q = (jnp.dot(bf(feat), params["output"]["w_t"],
                 preferred_element_type=jnp.float32)
         + params["output"]["b"])
    return q, h1[None, :, :], h2[None, :, :]


# ----------------------------------------------------------------------------
if __name__ == "__main__":
    batch = 8
    seq = 8
    input_size = 16
    hidden_size = 32
    dense_layers = 2
    dense_size = 64
    num_actions = 4

    key = jax.random.PRNGKey(0)
    k_param, k_x = jax.random.split(key)

    params = init_dqn_params(k_param, input_size, hidden_size, num_actions,
                             dense_layers, dense_size)

    x = jax.random.normal(k_x, (batch, seq, input_size), jnp.float32)
    # init_hidden(batch): zeros of shape (1, B, H) for each RNN layer.
    h1_init = jnp.zeros((1, batch, hidden_size), jnp.float32)
    h2_init = jnp.zeros((1, batch, hidden_size), jnp.float32)

    q, h1_out, h2_out = jax.jit(dqn_forward)(params, x, h1_init, h2_init)
    jax.block_until_ready((q, h1_out, h2_out))

    assert q.shape == (batch, num_actions)
    assert h1_out.shape == (1, batch, hidden_size)
    assert h2_out.shape == (1, batch, hidden_size)

    # Correctness check against a pure-JAX reference with matching numerics.
    q_r, h1_r, h2_r = jax.jit(dqn_reference)(params, x, h1_init, h2_init)
    jax.block_until_ready((q_r, h1_r, h2_r))
    assert bool(jnp.allclose(q, q_r, rtol=1e-2, atol=1e-2))
    assert bool(jnp.allclose(h1_out, h1_r, rtol=1e-2, atol=1e-2))
    assert bool(jnp.allclose(h2_out, h2_r, rtol=1e-2, atol=1e-2))

    print("KERNEL_OK")
</pallas_src>

<mosaic_0001>
module attributes {stable_mosaic.version = 11 : i64} {
  func.func @dqn_fused_kernel(%arg0: memref<8x8x16xf32, #tpu.memory_space<vmem>>, %arg1: memref<1x8x32xf32, #tpu.memory_space<vmem>>, %arg2: memref<1x8x32xf32, #tpu.memory_space<vmem>>, %arg3: memref<16x32xbf16, #tpu.memory_space<vmem>>, %arg4: memref<32x32xbf16, #tpu.memory_space<vmem>>, %arg5: memref<1x32xf32, #tpu.memory_space<vmem>>, %arg6: memref<32x32xbf16, #tpu.memory_space<vmem>>, %arg7: memref<32x32xbf16, #tpu.memory_space<vmem>>, %arg8: memref<1x32xf32, #tpu.memory_space<vmem>>, %arg9: memref<32x64xbf16, #tpu.memory_space<vmem>>, %arg10: memref<1x64xf32, #tpu.memory_space<vmem>>, %arg11: memref<64x32xbf16, #tpu.memory_space<vmem>>, %arg12: memref<1x32xf32, #tpu.memory_space<vmem>>, %arg13: memref<32x4xbf16, #tpu.memory_space<vmem>>, %arg14: memref<1x4xf32, #tpu.memory_space<vmem>>, %arg15: memref<8x128xf32, #tpu.memory_space<vmem>>, %arg16: memref<8x8x32xf32, #tpu.memory_space<vmem>>) attributes {dimension_semantics = [], scalar_prefetch = 0 : i64, scratch_operands = 1 : i64, tpu.core_type = #tpu.core_type<tc>} {
    %c0 = arith.constant 0 : index
    %c0_0 = arith.constant 0 : index
    %c0_1 = arith.constant 0 : index
    %0 = vector.load %arg0[%c0, %c0_0, %c0_1] : memref<8x8x16xf32, #tpu.memory_space<vmem>>, vector<8x8x16xf32>
    %1 = vector.shape_cast %0 : vector<8x8x16xf32> to vector<64x16xf32>
    %2 = arith.truncf %1 : vector<64x16xf32> to vector<64x16xbf16>
    %c0_2 = arith.constant 0 : index
    %c0_3 = arith.constant 0 : index
    %3 = vector.load %arg3[%c0_2, %c0_3] : memref<16x32xbf16, #tpu.memory_space<vmem>>, vector<16x32xbf16>
    %cst = arith.constant dense<0.000000e+00> : vector<64x32xf32>
    %4 = tpu.matmul %2, %3, %cst {dimension_numbers = #tpu.dot_dimension_numbers<[1], [0], [0], [1], [0, 0, 1, 1], [], []>} : vector<64x16xbf16>, vector<16x32xbf16>, vector<64x32xf32> -> vector<64x32xf32>
    %c0_4 = arith.constant 0 : index
    %c0_5 = arith.constant 0 : index
    %5 = vector.load %arg5[%c0_4, %c0_5] : memref<1x32xf32, #tpu.memory_space<vmem>>, vector<1x32xf32>
    %6 = vector.broadcast %5 : vector<1x32xf32> to vector<64x32xf32>
    %7 = arith.addf %4, %6 : vector<64x32xf32>
    %8 = vector.shape_cast %7 : vector<64x32xf32> to vector<8x8x32xf32>
    %c0_6 = arith.constant 0 : index
    %c0_7 = arith.constant 0 : index
    %c0_8 = arith.constant 0 : index
    %9 = vector.load %arg16[%c0_6, %c0_7, %c0_8] : memref<8x8x32xf32, #tpu.memory_space<vmem>>, vector<8x8x32xf32>
    tpu.vector_store %arg16[%c0_6, %c0_7, %c0_8], %8 {strides = array<i32>} : memref<8x8x32xf32, #tpu.memory_space<vmem>>, vector<8x8x32xf32>,
    %c0_9 = arith.constant 0 : index
    %c0_10 = arith.constant 0 : index
    %10 = vector.load %arg4[%c0_9, %c0_10] : memref<32x32xbf16, #tpu.memory_space<vmem>>, vector<32x32xbf16>
    %c0_11 = arith.constant 0 : index
    %c0_12 = arith.constant 0 : index
    %11 = vector.load %arg6[%c0_11, %c0_12] : memref<32x32xbf16, #tpu.memory_space<vmem>>, vector<32x32xbf16>
    %c0_13 = arith.constant 0 : index
    %c0_14 = arith.constant 0 : index
    %12 = vector.load %arg7[%c0_13, %c0_14] : memref<32x32xbf16, #tpu.memory_space<vmem>>, vector<32x32xbf16>
    %c0_15 = arith.constant 0 : index
    %c0_16 = arith.constant 0 : index
    %13 = vector.load %arg8[%c0_15, %c0_16] : memref<1x32xf32, #tpu.memory_space<vmem>>, vector<1x32xf32>
    %c0_17 = arith.constant 0 : index
    %c0_18 = arith.constant 0 : index
    %c0_19 = arith.constant 0 : index
    %14 = vector.load %arg1[%c0_17, %c0_18, %c0_19] : memref<1x8x32xf32, #tpu.memory_space<vmem>>, vector<1x8x32xf32>
    %15 = vector.shape_cast %14 : vector<1x8x32xf32> to vector<8x32xf32>
    %c0_20 = arith.constant 0 : index
    %c0_21 = arith.constant 0 : index
    %c0_22 = arith.constant 0 : index
    %16 = vector.load %arg2[%c0_20, %c0_21, %c0_22] : memref<1x8x32xf32, #tpu.memory_space<vmem>>, vector<1x8x32xf32>
    %17 = vector.shape_cast %16 : vector<1x8x32xf32> to vector<8x32xf32>
    %c0_23 = arith.constant 0 : index
    %c0_24 = arith.constant 0 : index
    %c0_25 = arith.constant 0 : index
    %18 = vector.load %arg16[%c0_23, %c0_24, %c0_25] : memref<8x8x32xf32, #tpu.memory_space<vmem>>, vector<1x8x32xf32>
    %19 = vector.shape_cast %18 : vector<1x8x32xf32> to vector<8x32xf32>
    %20 = arith.truncf %15 : vector<8x32xf32> to vector<8x32xbf16>
    %cst_26 = arith.constant dense<0.000000e+00> : vector<8x32xf32>
    %21 = tpu.matmul %20, %10, %cst_26 {dimension_numbers = #tpu.dot_dimension_numbers<[1], [0], [0], [1], [0, 0, 1, 1], [], []>} : vector<8x32xbf16>, vector<32x32xbf16>, vector<8x32xf32> -> vector<8x32xf32>
    %22 = arith.addf %19, %21 : vector<8x32xf32>
    %23 = math.tanh %22 : vector<8x32xf32>
    %24 = arith.truncf %23 : vector<8x32xf32> to vector<8x32xbf16>
    %cst_27 = arith.constant dense<0.000000e+00> : vector<8x32xf32>
    %25 = tpu.matmul %24, %11, %cst_27 {dimension_numbers = #tpu.dot_dimension_numbers<[1], [0], [0], [1], [0, 0, 1, 1], [], []>} : vector<8x32xbf16>, vector<32x32xbf16>, vector<8x32xf32> -> vector<8x32xf32>
    %26 = arith.truncf %17 : vector<8x32xf32> to vector<8x32xbf16>
    %cst_28 = arith.constant dense<0.000000e+00> : vector<8x32xf32>
    %27 = tpu.matmul %26, %12, %cst_28 {dimension_numbers = #tpu.dot_dimension_numbers<[1], [0], [0], [1], [0, 0, 1, 1], [], []>} : vector<8x32xbf16>, vector<32x32xbf16>, vector<8x32xf32> -> vector<8x32xf32>
    %28 = arith.addf %25, %27 : vector<8x32xf32>
    %29 = vector.broadcast %13 : vector<1x32xf32> to vector<8x32xf32>
    %30 = arith.addf %28, %29 : vector<8x32xf32>
    %31 = math.tanh %30 : vector<8x32xf32>
    %c1 = arith.constant 1 : index
    %c0_29 = arith.constant 0 : index
    %c0_30 = arith.constant 0 : index
    %32 = vector.load %arg16[%c1, %c0_29, %c0_30] : memref<8x8x32xf32, #tpu.memory_space<vmem>>, vector<1x8x32xf32>
    %33 = vector.shape_cast %32 : vector<1x8x32xf32> to vector<8x32xf32>
    %34 = arith.truncf %23 : vector<8x32xf32> to vector<8x32xbf16>
    %cst_31 = arith.constant dense<0.000000e+00> : vector<8x32xf32>
    %35 = tpu.matmul %34, %10, %cst_31 {dimension_numbers = #tpu.dot_dimension_numbers<[1], [0], [0], [1], [0, 0, 1, 1], [], []>} : vector<8x32xbf16>, vector<32x32xbf16>, vector<8x32xf32> -> vector<8x32xf32>
    %36 = arith.addf %33, %35 : vector<8x32xf32>
    %37 = math.tanh %36 : vector<8x32xf32>
    %38 = arith.truncf %37 : vector<8x32xf32> to vector<8x32xbf16>
    %cst_32 = arith.constant dense<0.000000e+00> : vector<8x32xf32>
    %39 = tpu.matmul %38, %11, %cst_32 {dimension_numbers = #tpu.dot_dimension_numbers<[1], [0], [0], [1], [0, 0, 1, 1], [], []>} : vector<8x32xbf16>, vector<32x32xbf16>, vector<8x32xf32> -> vector<8x32xf32>
    %40 = arith.truncf %31 : vector<8x32xf32> to vector<8x32xbf16>
    %cst_33 = arith.constant dense<0.000000e+00> : vector<8x32xf32>
    %41 = tpu.matmul %40, %12, %cst_33 {dimension_numbers = #tpu.dot_dimension_numbers<[1], [0], [0], [1], [0, 0, 1, 1], [], []>} : vector<8x32xbf16>, vector<32x32xbf16>, vector<8x32xf32> -> vector<8x32xf32>
    %42 = arith.addf %39, %41 : vector<8x32xf32>
    %43 = vector.broadcast %13 : vector<1x32xf32> to vector<8x32xf32>
    %44 = arith.addf %42, %43 : vector<8x32xf32>
    %45 = math.tanh %44 : vector<8x32xf32>
    %c2 = arith.constant 2 : index
    %c0_34 = arith.constant 0 : index
    %c0_35 = arith.constant 0 : index
    %46 = vector.load %arg16[%c2, %c0_34, %c0_35] : memref<8x8x32xf32, #tpu.memory_space<vmem>>, vector<1x8x32xf32>
    %47 = vector.shape_cast %46 : vector<1x8x32xf32> to vector<8x32xf32>
    %48 = arith.truncf %37 : vector<8x32xf32> to vector<8x32xbf16>
    %cst_36 = arith.constant dense<0.000000e+00> : vector<8x32xf32>
    %49 = tpu.matmul %48, %10, %cst_36 {dimension_numbers = #tpu.dot_dimension_numbers<[1], [0], [0], [1], [0, 0, 1, 1], [], []>} : vector<8x32xbf16>, vector<32x32xbf16>, vector<8x32xf32> -> vector<8x32xf32>
    %50 = arith.addf %47, %49 : vector<8x32xf32>
    %51 = math.tanh %50 : vector<8x32xf32>
    %52 = arith.truncf %51 : vector<8x32xf32> to vector<8x32xbf16>
    %cst_37 = arith.constant dense<0.000000e+00> : vector<8x32xf32>
    %53 = tpu.matmul %52, %11, %cst_37 {dimension_numbers = #tpu.dot_dimension_numbers<[1], [0], [0], [1], [0, 0, 1, 1], [], []>} : vector<8x32xbf16>, vector<32x32xbf16>, vector<8x32xf32> -> vector<8x32xf32>
    %54 = arith.truncf %45 : vector<8x32xf32> to vector<8x32xbf16>
    %cst_38 = arith.constant dense<0.000000e+00> : vector<8x32xf32>
    %55 = tpu.matmul %54, %12, %cst_38 {dimension_numbers = #tpu.dot_dimension_numbers<[1], [0], [0], [1], [0, 0, 1, 1], [], []>} : vector<8x32xbf16>, vector<32x32xbf16>, vector<8x32xf32> -> vector<8x32xf32>
    %56 = arith.addf %53, %55 : vector<8x32xf32>
    %57 = vector.broadcast %13 : vector<1x32xf32> to vector<8x32xf32>
    %58 = arith.addf %56, %57 : vector<8x32xf32>
    %59 = math.tanh %58 : vector<8x32xf32>
    %c3 = arith.constant 3 : index
    %c0_39 = arith.constant 0 : index
    %c0_40 = arith.constant 0 : index
    %60 = vector.load %arg16[%c3, %c0_39, %c0_40] : memref<8x8x32xf32, #tpu.memory_space<vmem>>, vector<1x8x32xf32>
    %61 = vector.shape_cast %60 : vector<1x8x32xf32> to vector<8x32xf32>
    %62 = arith.truncf %51 : vector<8x32xf32> to vector<8x32xbf16>
    %cst_41 = arith.constant dense<0.000000e+00> : vector<8x32xf32>
    %63 = tpu.matmul %62, %10, %cst_41 {dimension_numbers = #tpu.dot_dimension_numbers<[1], [0], [0], [1], [0, 0, 1, 1], [], []>} : vector<8x32xbf16>, vector<32x32xbf16>, vector<8x32xf32> -> vector<8x32xf32>
    %64 = arith.addf %61, %63 : vector<8x32xf32>
    %65 = math.tanh %64 : vector<8x32xf32>
    %66 = arith.truncf %65 : vector<8x32xf32> to vector<8x32xbf16>
    %cst_42 = arith.constant dense<0.000000e+00> : vector<8x32xf32>
    %67 = tpu.matmul %66, %11, %cst_42 {dimension_numbers = #tpu.dot_dimension_numbers<[1], [0], [0], [1], [0, 0, 1, 1], [], []>} : vector<8x32xbf16>, vector<32x32xbf16>, vector<8x32xf32> -> vector<8x32xf32>
    %68 = arith.truncf %59 : vector<8x32xf32> to vector<8x32xbf16>
    %cst_43 = arith.constant dense<0.000000e+00> : vector<8x32xf32>
    %69 = tpu.matmul %68, %12, %cst_43 {dimension_numbers = #tpu.dot_dimension_numbers<[1], [0], [0], [1], [0, 0, 1, 1], [], []>} : vector<8x32xbf16>, vector<32x32xbf16>, vector<8x32xf32> -> vector<8x32xf32>
    %70 = arith.addf %67, %69 : vector<8x32xf32>
    %71 = vector.broadcast %13 : vector<1x32xf32> to vector<8x32xf32>
    %72 = arith.addf %70, %71 : vector<8x32xf32>
    %73 = math.tanh %72 : vector<8x32xf32>
    %c4 = arith.constant 4 : index
    %c0_44 = arith.constant 0 : index
    %c0_45 = arith.constant 0 : index
    %74 = vector.load %arg16[%c4, %c0_44, %c0_45] : memref<8x8x32xf32, #tpu.memory_space<vmem>>, vector<1x8x32xf32>
    %75 = vector.shape_cast %74 : vector<1x8x32xf32> to vector<8x32xf32>
    %76 = arith.truncf %65 : vector<8x32xf32> to vector<8x32xbf16>
    %cst_46 = arith.constant dense<0.000000e+00> : vector<8x32xf32>
    %77 = tpu.matmul %76, %10, %cst_46 {dimension_numbers = #tpu.dot_dimension_numbers<[1], [0], [0], [1], [0, 0, 1, 1], [], []>} : vector<8x32xbf16>, vector<32x32xbf16>, vector<8x32xf32> -> vector<8x32xf32>
    %78 = arith.addf %75, %77 : vector<8x32xf32>
    %79 = math.tanh %78 : vector<8x32xf32>
    %80 = arith.truncf %79 : vector<8x32xf32> to vector<8x32xbf16>
    %cst_47 = arith.constant dense<0.000000e+00> : vector<8x32xf32>
    %81 = tpu.matmul %80, %11, %cst_47 {dimension_numbers = #tpu.dot_dimension_numbers<[1], [0], [0], [1], [0, 0, 1, 1], [], []>} : vector<8x32xbf16>, vector<32x32xbf16>, vector<8x32xf32> -> vector<8x32xf32>
    %82 = arith.truncf %73 : vector<8x32xf32> to vector<8x32xbf16>
    %cst_48 = arith.constant dense<0.000000e+00> : vector<8x32xf32>
    %83 = tpu.matmul %82, %12, %cst_48 {dimension_numbers = #tpu.dot_dimension_numbers<[1], [0], [0], [1], [0, 0, 1, 1], [], []>} : vector<8x32xbf16>, vector<32x32xbf16>, vector<8x32xf32> -> vector<8x32xf32>
    %84 = arith.addf %81, %83 : vector<8x32xf32>
    %85 = vector.broadcast %13 : vector<1x32xf32> to vector<8x32xf32>
    %86 = arith.addf %84, %85 : vector<8x32xf32>
    %87 = math.tanh %86 : vector<8x32xf32>
    %c5 = arith.constant 5 : index
    %c0_49 = arith.constant 0 : index
    %c0_50 = arith.constant 0 : index
    %88 = vector.load %arg16[%c5, %c0_49, %c0_50] : memref<8x8x32xf32, #tpu.memory_space<vmem>>, vector<1x8x32xf32>
    %89 = vector.shape_cast %88 : vector<1x8x32xf32> to vector<8x32xf32>
    %90 = arith.truncf %79 : vector<8x32xf32> to vector<8x32xbf16>
    %cst_51 = arith.constant dense<0.000000e+00> : vector<8x32xf32>
    %91 = tpu.matmul %90, %10, %cst_51 {dimension_numbers = #tpu.dot_dimension_numbers<[1], [0], [0], [1], [0, 0, 1, 1], [], []>} : vector<8x32xbf16>, vector<32x32xbf16>, vector<8x32xf32> -> vector<8x32xf32>
    %92 = arith.addf %89, %91 : vector<8x32xf32>
    %93 = math.tanh %92 : vector<8x32xf32>
    %94 = arith.truncf %93 : vector<8x32xf32> to vector<8x32xbf16>
    %cst_52 = arith.constant dense<0.000000e+00> : vector<8x32xf32>
    %95 = tpu.matmul %94, %11, %cst_52 {dimension_numbers = #tpu.dot_dimension_numbers<[1], [0], [0], [1], [0, 0, 1, 1], [], []>} : vector<8x32xbf16>, vector<32x32xbf16>, vector<8x32xf32> -> vector<8x32xf32>
    %96 = arith.truncf %87 : vector<8x32xf32> to vector<8x32xbf16>
    %cst_53 = arith.constant dense<0.000000e+00> : vector<8x32xf32>
    %97 = tpu.matmul %96, %12, %cst_53 {dimension_numbers = #tpu.dot_dimension_numbers<[1], [0], [0], [1], [0, 0, 1, 1], [], []>} : vector<8x32xbf16>, vector<32x32xbf16>, vector<8x32xf32> -> vector<8x32xf32>
    %98 = arith.addf %95, %97 : vector<8x32xf32>
    %99 = vector.broadcast %13 : vector<1x32xf32> to vector<8x32xf32>
    %100 = arith.addf %98, %99 : vector<8x32xf32>
    %101 = math.tanh %100 : vector<8x32xf32>
    %c6 = arith.constant 6 : index
    %c0_54 = arith.constant 0 : index
    %c0_55 = arith.constant 0 : index
    %102 = vector.load %arg16[%c6, %c0_54, %c0_55] : memref<8x8x32xf32, #tpu.memory_space<vmem>>, vector<1x8x32xf32>
    %103 = vector.shape_cast %102 : vector<1x8x32xf32> to vector<8x32xf32>
    %104 = arith.truncf %93 : vector<8x32xf32> to vector<8x32xbf16>
    %cst_56 = arith.constant dense<0.000000e+00> : vector<8x32xf32>
    %105 = tpu.matmul %104, %10, %cst_56 {dimension_numbers = #tpu.dot_dimension_numbers<[1], [0], [0], [1], [0, 0, 1, 1], [], []>} : vector<8x32xbf16>, vector<32x32xbf16>, vector<8x32xf32> -> vector<8x32xf32>
    %106 = arith.addf %103, %105 : vector<8x32xf32>
    %107 = math.tanh %106 : vector<8x32xf32>
    %108 = arith.truncf %107 : vector<8x32xf32> to vector<8x32xbf16>
    %cst_57 = arith.constant dense<0.000000e+00> : vector<8x32xf32>
    %109 = tpu.matmul %108, %11, %cst_57 {dimension_numbers = #tpu.dot_dimension_numbers<[1], [0], [0], [1], [0, 0, 1, 1], [], []>} : vector<8x32xbf16>, vector<32x32xbf16>, vector<8x32xf32> -> vector<8x32xf32>
    %110 = arith.truncf %101 : vector<8x32xf32> to vector<8x32xbf16>
    %cst_58 = arith.constant dense<0.000000e+00> : vector<8x32xf32>
    %111 = tpu.matmul %110, %12, %cst_58 {dimension_numbers = #tpu.dot_dimension_numbers<[1], [0], [0], [1], [0, 0, 1, 1], [], []>} : vector<8x32xbf16>, vector<32x32xbf16>, vector<8x32xf32> -> vector<8x32xf32>
    %112 = arith.addf %109, %111 : vector<8x32xf32>
    %113 = vector.broadcast %13 : vector<1x32xf32> to vector<8x32xf32>
    %114 = arith.addf %112, %113 : vector<8x32xf32>
    %115 = math.tanh %114 : vector<8x32xf32>
    %c7 = arith.constant 7 : index
    %c0_59 = arith.constant 0 : index
    %c0_60 = arith.constant 0 : index
    %116 = vector.load %arg16[%c7, %c0_59, %c0_60] : memref<8x8x32xf32, #tpu.memory_space<vmem>>, vector<1x8x32xf32>
    %117 = vector.shape_cast %116 : vector<1x8x32xf32> to vector<8x32xf32>
    %118 = arith.truncf %107 : vector<8x32xf32> to vector<8x32xbf16>
    %cst_61 = arith.constant dense<0.000000e+00> : vector<8x32xf32>
    %119 = tpu.matmul %118, %10, %cst_61 {dimension_numbers = #tpu.dot_dimension_numbers<[1], [0], [0], [1], [0, 0, 1, 1], [], []>} : vector<8x32xbf16>, vector<32x32xbf16>, vector<8x32xf32> -> vector<8x32xf32>
    %120 = arith.addf %117, %119 : vector<8x32xf32>
    %121 = math.tanh %120 : vector<8x32xf32>
    %122 = arith.truncf %121 : vector<8x32xf32> to vector<8x32xbf16>
    %cst_62 = arith.constant dense<0.000000e+00> : vector<8x32xf32>
    %123 = tpu.matmul %122, %11, %cst_62 {dimension_numbers = #tpu.dot_dimension_numbers<[1], [0], [0], [1], [0, 0, 1, 1], [], []>} : vector<8x32xbf16>, vector<32x32xbf16>, vector<8x32xf32> -> vector<8x32xf32>
    %124 = arith.truncf %115 : vector<8x32xf32> to vector<8x32xbf16>
    %cst_63 = arith.constant dense<0.000000e+00> : vector<8x32xf32>
    %125 = tpu.matmul %124, %12, %cst_63 {dimension_numbers = #tpu.dot_dimension_numbers<[1], [0], [0], [1], [0, 0, 1, 1], [], []>} : vector<8x32xbf16>, vector<32x32xbf16>, vector<8x32xf32> -> vector<8x32xf32>
    %126 = arith.addf %123, %125 : vector<8x32xf32>
    %127 = vector.broadcast %13 : vector<1x32xf32> to vector<8x32xf32>
    %128 = arith.addf %126, %127 : vector<8x32xf32>
    %129 = math.tanh %128 : vector<8x32xf32>
    %c0_64 = arith.constant 0 : index
    %c0_65 = arith.constant 0 : index
    %130 = vector.load %arg9[%c0_64, %c0_65] : memref<32x64xbf16, #tpu.memory_space<vmem>>, vector<32x64xbf16>
    %c0_66 = arith.constant 0 : index
    %c0_67 = arith.constant 0 : index
    %131 = vector.load %arg10[%c0_66, %c0_67] : memref<1x64xf32, #tpu.memory_space<vmem>>, vector<1x64xf32>
    %132 = arith.truncf %129 : vector<8x32xf32> to vector<8x32xbf16>
    %cst_68 = arith.constant dense<0.000000e+00> : vector<8x64xf32>
    %133 = tpu.matmul %132, %130, %cst_68 {dimension_numbers = #tpu.dot_dimension_numbers<[1], [0], [0], [1], [0, 0, 1, 1], [], []>} : vector<8x32xbf16>, vector<32x64xbf16>, vector<8x64xf32> -> vector<8x64xf32>
    %134 = vector.broadcast %131 : vector<1x64xf32> to vector<8x64xf32>
    %135 = arith.addf %133, %134 : vector<8x64xf32>
    %cst_69 = arith.constant 0.000000e+00 : f32
    %136 = vector.broadcast %cst_69 : f32 to vector<8x64xf32>
    %137 = arith.maximumf %135, %136 : vector<8x64xf32>
    %c0_70 = arith.constant 0 : index
    %c0_71 = arith.constant 0 : index
    %138 = vector.load %arg11[%c0_70, %c0_71] : memref<64x32xbf16, #tpu.memory_space<vmem>>, vector<64x32xbf16>
    %c0_72 = arith.constant 0 : index
    %c0_73 = arith.constant 0 : index
    %139 = vector.load %arg12[%c0_72, %c0_73] : memref<1x32xf32, #tpu.memory_space<vmem>>, vector<1x32xf32>
    %140 = arith.truncf %137 : vector<8x64xf32> to vector<8x64xbf16>
    %cst_74 = arith.constant dense<0.000000e+00> : vector<8x32xf32>
    %141 = tpu.matmul %140, %138, %cst_74 {dimension_numbers = #tpu.dot_dimension_numbers<[1], [0], [0], [1], [0, 0, 1, 1], [], []>} : vector<8x64xbf16>, vector<64x32xbf16>, vector<8x32xf32> -> vector<8x32xf32>
    %142 = vector.broadcast %139 : vector<1x32xf32> to vector<8x32xf32>
    %143 = arith.addf %141, %142 : vector<8x32xf32>
    %cst_75 = arith.constant 0.000000e+00 : f32
    %144 = vector.broadcast %cst_75 : f32 to vector<8x32xf32>
    %145 = arith.maximumf %143, %144 : vector<8x32xf32>
    %146 = arith.truncf %145 : vector<8x32xf32> to vector<8x32xbf16>
    %c0_76 = arith.constant 0 : index
    %c0_77 = arith.constant 0 : index
    %147 = vector.load %arg13[%c0_76, %c0_77] : memref<32x4xbf16, #tpu.memory_space<vmem>>, vector<32x4xbf16>
    %cst_78 = arith.constant dense<0.000000e+00> : vector<8x4xf32>
    %148 = tpu.matmul %146, %147, %cst_78 {dimension_numbers = #tpu.dot_dimension_numbers<[1], [0], [0], [1], [0, 0, 1, 1], [], []>} : vector<8x32xbf16>, vector<32x4xbf16>, vector<8x4xf32> -> vector<8x4xf32>
    %c0_79 = arith.constant 0 : index
    %c0_80 = arith.constant 0 : index
    %149 = vector.load %arg14[%c0_79, %c0_80] : memref<1x4xf32, #tpu.memory_space<vmem>>, vector<1x4xf32>
    %150 = vector.broadcast %149 : vector<1x4xf32> to vector<8x4xf32>
    %151 = arith.addf %148, %150 : vector<8x4xf32>
    %cst_81 = arith.constant 0.000000e+00 : f32
    %152 = vector.broadcast %cst_81 : f32 to vector<8x60xf32>
    %153 = tpu.concatenate %121, %129, %151, %152 in 1 : vector<8x32xf32>, vector<8x32xf32>, vector<8x4xf32>, vector<8x60xf32> -> vector<8x128xf32>
    %c0_82 = arith.constant 0 : index
    %c0_83 = arith.constant 0 : index
    %154 = vector.load %arg15[%c0_82, %c0_83] : memref<8x128xf32, #tpu.memory_space<vmem>>, vector<8x128xf32>
    tpu.vector_store %arg15[%c0_82, %c0_83], %153 {strides = array<i32>} : memref<8x128xf32, #tpu.memory_space<vmem>>, vector<8x128xf32>,
    return
  }
}

</mosaic_0001>

<llo_original>
// kernel: dqn_forward.1
$region0: #{dqn_forward.1}
  #allocation0 [shape = 'u32[]', space=smem, size = 0x4, offset = 0x4, fixed_abs, tag = 'smem constant byte address 0x4 - core index']
  #allocation1 [shape = 'u32[144,128]{1,0:T(1,128)}', space=vmem, size = 0x12000, scoped, tag = 'internal scratch']
  #allocation2 [shape = 'f32[8,8,32]{2,1,0:T(8,128)}', space=vmem, size = 0x8000, scoped, tag = 'scratch operand']
  %s0 = inlined_call_operand.vmem [shape: f32[8,8,16], index: 0, kind: input, shape index: {}]
  %s1 = inlined_call_operand.vmem [shape: f32[1,8,32], index: 1, kind: input, shape index: {}]
  %s2 = inlined_call_operand.vmem [shape: f32[1,8,32], index: 2, kind: input, shape index: {}]
  %s3 = inlined_call_operand.vmem [shape: bf16[16,32], index: 3, kind: input, shape index: {}]
  %s4 = inlined_call_operand.vmem [shape: bf16[32,32], index: 4, kind: input, shape index: {}]
  %s5 = inlined_call_operand.vmem [shape: f32[1,32], index: 5, kind: input, shape index: {}]
  %s6 = inlined_call_operand.vmem [shape: bf16[32,32], index: 6, kind: input, shape index: {}]
  %s7 = inlined_call_operand.vmem [shape: bf16[32,32], index: 7, kind: input, shape index: {}]
  %s8 = inlined_call_operand.vmem [shape: f32[1,32], index: 8, kind: input, shape index: {}]
  %s9 = inlined_call_operand.vmem [shape: bf16[32,64], index: 9, kind: input, shape index: {}]
  %s10 = inlined_call_operand.vmem [shape: f32[1,64], index: 10, kind: input, shape index: {}]
  %s11 = inlined_call_operand.vmem [shape: bf16[64,32], index: 11, kind: input, shape index: {}]
  %s12 = inlined_call_operand.vmem [shape: f32[1,32], index: 12, kind: input, shape index: {}]
  %s13 = inlined_call_operand.vmem [shape: bf16[32,4], index: 13, kind: input, shape index: {}]
  %s14 = inlined_call_operand.vmem [shape: f32[1,4], index: 14, kind: input, shape index: {}]
  %s15 = inlined_call_operand.vmem [shape: f32[8,128], index: 15, kind: output, shape index: {}]
  %s16 = sld [smem:[#allocation0]]
  $region70: #{dqn_forward.1} parent=0
    _
  %s18 = ssub.s32 1, %s16
  %s19 = scalar_select 0, %s18, %s16
  // Predicated region
  $region2: #{dqn_forward.1} parent=0 // pred_check
    _
  $region3: #{dqn_forward.1} parent=0 // pred_check_branch
    %21 = sbr.rel (0) target = $region5
  $region4: #{dqn_forward.1} parent=0 // pred_region
    _
  $region5: #{dqn_forward.1} parent=0 // pred_fallthru
    _
  // Predicated region
  $region6: #{dqn_forward.1} parent=0 // pred_check
    _
  $region7: #{dqn_forward.1} parent=0 // pred_check_branch
    %23 = sbr.rel (0) target = $region9
  $region8: #{dqn_forward.1} parent=0 // pred_region
    _
  $region9: #{dqn_forward.1} parent=0 // pred_fallthru
    _
  // Predicated region
  $region10: #{dqn_forward.1} parent=0 // pred_check
    _
  $region11: #{dqn_forward.1} parent=0 // pred_check_branch
    %25 = sbr.rel (0) target = $region13
  $region12: #{dqn_forward.1} parent=0 // pred_region
    _
  $region13: #{dqn_forward.1} parent=0 // pred_fallthru
    _
  // Predicated region
  $region14: #{dqn_forward.1} parent=0 // pred_check
    _
  $region15: #{dqn_forward.1} parent=0 // pred_check_branch
    %27 = sbr.rel (0) target = $region17
  $region16: #{dqn_forward.1} parent=0 // pred_region
    _
  $region17: #{dqn_forward.1} parent=0 // pred_fallthru
    _
  // Predicated region
  $region18: #{dqn_forward.1} parent=0 // pred_check
    _
  $region19: #{dqn_forward.1} parent=0 // pred_check_branch
    %29 = sbr.rel (0) target = $region21
  $region20: #{dqn_forward.1} parent=0 // pred_region
    _
  $region21: #{dqn_forward.1} parent=0 // pred_fallthru
    _
  // Predicated region
  $region22: #{dqn_forward.1} parent=0 // pred_check
    _
  $region23: #{dqn_forward.1} parent=0 // pred_check_branch
    %31 = sbr.rel (0) target = $region25
  $region24: #{dqn_forward.1} parent=0 // pred_region
    _
  $region25: #{dqn_forward.1} parent=0 // pred_fallthru
    _
  // Predicated region
  $region26: #{dqn_forward.1} parent=0 // pred_check
    _
  $region27: #{dqn_forward.1} parent=0 // pred_check_branch
    %33 = sbr.rel (0) target = $region29
  $region28: #{dqn_forward.1} parent=0 // pred_region
    _
  $region29: #{dqn_forward.1} parent=0 // pred_fallthru
    _
  // Predicated region
  $region30: #{dqn_forward.1} parent=0 // pred_check
    _
  $region31: #{dqn_forward.1} parent=0 // pred_check_branch
    %35 = sbr.rel (0) target = $region33
  $region32: #{dqn_forward.1} parent=0 // pred_region
    _
  $region33: #{dqn_forward.1} parent=0 // pred_fallthru
    _
  // Predicated region
  $region34: #{dqn_forward.1} parent=0 // pred_check
    _
  $region35: #{dqn_forward.1} parent=0 // pred_check_branch
    %37 = sbr.rel (0) target = $region37
  $region36: #{dqn_forward.1} parent=0 // pred_region
    _
  $region37: #{dqn_forward.1} parent=0 // pred_fallthru
    _
  // Predicated region
  $region38: #{dqn_forward.1} parent=0 // pred_check
    _
  $region39: #{dqn_forward.1} parent=0 // pred_check_branch
    %39 = sbr.rel (0) target = $region41
  $region40: #{dqn_forward.1} parent=0 // pred_region
    _
  $region41: #{dqn_forward.1} parent=0 // pred_fallthru
    _
  // Predicated region
  $region42: #{dqn_forward.1} parent=0 // pred_check
    _
  $region43: #{dqn_forward.1} parent=0 // pred_check_branch
    %41 = sbr.rel (0) target = $region45
  $region44: #{dqn_forward.1} parent=0 // pred_region
    _
  $region45: #{dqn_forward.1} parent=0 // pred_fallthru
    _
  // Predicated region
  $region46: #{dqn_forward.1} parent=0 // pred_check
    _
  $region47: #{dqn_forward.1} parent=0 // pred_check_branch
    %43 = sbr.rel (0) target = $region49
  $region48: #{dqn_forward.1} parent=0 // pred_region
    _
  $region49: #{dqn_forward.1} parent=0 // pred_fallthru
    _
  // Predicated region
  $region50: #{dqn_forward.1} parent=0 // pred_check
    _
  $region51: #{dqn_forward.1} parent=0 // pred_check_branch
    %45 = sbr.rel (0) target = $region53
  $region52: #{dqn_forward.1} parent=0 // pred_region
    _
  $region53: #{dqn_forward.1} parent=0 // pred_fallthru
    _
  // Predicated region
  $region54: #{dqn_forward.1} parent=0 // pred_check
    _
  $region55: #{dqn_forward.1} parent=0 // pred_check_branch
    %47 = sbr.rel (0) target = $region57
  $region56: #{dqn_forward.1} parent=0 // pred_region
    _
  $region57: #{dqn_forward.1} parent=0 // pred_fallthru
    _
  // Predicated region
  $region58: #{dqn_forward.1} parent=0 // pred_check
    _
  $region59: #{dqn_forward.1} parent=0 // pred_check_branch
    %49 = sbr.rel (0) target = $region61
  $region60: #{dqn_forward.1} parent=0 // pred_region
    _
  $region61: #{dqn_forward.1} parent=0 // pred_fallthru
    _
  %v51 = vld [vmem:[%s0] sm:$0xff]
  %v52 = vld [vmem:[%s0 + $0x8] sm:$0xff]
  %v53 = vld [vmem:[%s0 + $0x10] sm:$0xff]
  %v54 = vld [vmem:[%s0 + $0x18] sm:$0xff]
  %v55 = vld [vmem:[%s0 + $0x20] sm:$0xff]
  %v56 = vld [vmem:[%s0 + $0x28] sm:$0xff]
  %v57 = vld [vmem:[%s0 + $0x30] sm:$0xff]
  %v58 = vld [vmem:[%s0 + $0x38] sm:$0xff]
  %v59 = vpack.c.bf16 %v52, %v51
  %v60 = vpack.c.bf16 %v54, %v53
  %v61 = vpack.c.bf16 %v56, %v55
  %v62 = vpack.c.bf16 %v58, %v57
  %v63 = vld [vmem:[%s3] sm:$0xf]
  %v64 = vld [vmem:[%s3 + $0x4] sm:$0xf]
  %v65 = vld [vmem:[%s5] sm:$0x1]
  %v67 = vlaneseq
  %v68 = vshrl.u32 %v67, 7
  %v69 = vsub.s32 0, %v68
  %v70 = vrot.slane %v65, %v69
  %v74 = vunpack.c.l.b16 %v63
  %v75 = vunpack.c.l.b16 %v64
  %v76 = vpack.c.b16 %v75, %v74
  %vm78 = vcmask 130048
  %v80 = vsel %vm78, %v59, 0
  %v83 = vsel %vm78, %v60, 0
  %v86 = vsel %vm78, %v61, 0
  %v89 = vsel %vm78, %v62, 0
  %91 = vmatprep.subr.bf16.mxu0 0
  %92 = vmatpush1.bf16.msra.mxu0 %v76
  %93 = vmatprep.subr.bf16.mxu0 0
  %94 = vmatpush1.bf16.msra.mxu0 0
  %95 = vmatprep.subr.bf16.mxu0 0
  %96 = vmatpush1.bf16.msra.mxu0 0
  %97 = vmatprep.subr.bf16.mxu0 0
  %98 = vmatpush1.bf16.msra.mxu0 0
  %99 = vmatprep.subr.bf16.mxu0 0
  %100 = vmatpush1.bf16.msra.mxu0 0
  %101 = vmatprep.subr.bf16.mxu0 0
  %102 = vmatpush1.bf16.msra.mxu0 0
  %103 = vmatprep.subr.bf16.mxu0 0
  %104 = vmatpush1.bf16.msra.mxu0 0
  %105 = vmatprep.subr.bf16.mxu0 0
  %106 = vmatpush1.bf16.msra.mxu0 0
  %107 = vmatprep.subr.bf16.mxu0 0
  %108 = vmatpush1.bf16.msra.mxu0 0
  %109 = vmatprep.subr.bf16.mxu0 0
  %110 = vmatpush1.bf16.msra.mxu0 0
  %111 = vmatprep.subr.bf16.mxu0 0
  %112 = vmatpush1.bf16.msra.mxu0 0
  %113 = vmatprep.subr.bf16.mxu0 0
  %114 = vmatpush1.bf16.msra.mxu0 0
  %115 = vmatprep.subr.bf16.mxu0 0
  %116 = vmatpush1.bf16.msra.mxu0 0
  %117 = vmatprep.subr.bf16.mxu0 0
  %118 = vmatpush1.bf16.msra.mxu0 0
  %119 = vmatprep.subr.bf16.mxu0 0
  %120 = vmatpush1.bf16.msra.mxu0 0
  %121 = vmatprep.subr.bf16.mxu0 0
  %122 = vmatpush1.bf16.msra.mxu0 0
  %123 = vmatprep.mubr.bf16.mxu0 0
  %124 = vmatmul.mubr.bf16.gmra.mrb[0].mxu0 %v80
  %v125 = vpop.f32.mrb[0].mxu0
  %v126 = vadd.f32 %v70, %v125
  %v127 = vpop.f32.mrb[0].mxu0
  %v128 = vpop.f32.mrb[0].mxu0
  %v129 = vadd.f32 %v70, %v128
  %v130 = vpop.f32.mrb[0].mxu0
  %131 = vmatprep.mubr.bf16.mxu0 0
  %132 = vmatmul.mubr.bf16.gmra.mrb[0].mxu0 %v83
  %v133 = vpop.f32.mrb[0].mxu0
  %v134 = vadd.f32 %v70, %v133
  %v135 = vpop.f32.mrb[0].mxu0
  %v136 = vpop.f32.mrb[0].mxu0
  %v137 = vadd.f32 %v70, %v136
  %v138 = vpop.f32.mrb[0].mxu0
  %139 = vmatprep.mubr.bf16.mxu0 0
  %140 = vmatmul.mubr.bf16.gmra.mrb[0].mxu0 %v86
  %v141 = vpop.f32.mrb[0].mxu0
  %v142 = vadd.f32 %v70, %v141
  %v143 = vpop.f32.mrb[0].mxu0
  %v144 = vpop.f32.mrb[0].mxu0
  %v145 = vadd.f32 %v70, %v144
  %v146 = vpop.f32.mrb[0].mxu0
  %147 = vmatprep.mubr.bf16.mxu0 0
  %148 = vmatmul.mubr.bf16.gmra.mrb[0].mxu0 %v89
  %v149 = vpop.f32.mrb[0].mxu0
  %v150 = vadd.f32 %v70, %v149
  %v151 = vpop.f32.mrb[0].mxu0
  %v152 = vpop.f32.mrb[0].mxu0
  %v153 = vadd.f32 %v70, %v152
  %v154 = vpop.f32.mrb[0].mxu0
  %155 = vdwg.mxu0
  %vm156 = vcmask 261120
  %157 = vst.msk [vmem:[#allocation2] sm:$0xff] %vm156, %v126
  %158 = vst.msk [vmem:[#allocation2 + $0x8] sm:$0xff] %vm156, %v129
  %159 = vst.msk [vmem:[#allocation2 + $0x10] sm:$0xff] %vm156, %v134
  %160 = vst.msk [vmem:[#allocation2 + $0x18] sm:$0xff] %vm156, %v137
  %161 = vst.msk [vmem:[#allocation2 + $0x20] sm:$0xff] %vm156, %v142
  %162 = vst.msk [vmem:[#allocation2 + $0x28] sm:$0xff] %vm156, %v145
  %163 = vst.msk [vmem:[#allocation2 + $0x30] sm:$0xff] %vm156, %v150
  %164 = vst.msk [vmem:[#allocation2 + $0x38] sm:$0xff] %vm156, %v153
  %v165 = vld [vmem:[%s4] sm:$0xf]
  %v166 = vld [vmem:[%s4 + $0x4] sm:$0xf]
  %v167 = vld [vmem:[%s4 + $0x8] sm:$0xf]
  %v168 = vld [vmem:[%s4 + $0xc] sm:$0xf]
  %v169 = vld [vmem:[%s6] sm:$0xf]
  %v170 = vld [vmem:[%s6 + $0x4] sm:$0xf]
  %v171 = vld [vmem:[%s6 + $0x8] sm:$0xf]
  %v172 = vld [vmem:[%s6 + $0xc] sm:$0xf]
  %v173 = vld [vmem:[%s7] sm:$0xf]
  %v174 = vld [vmem:[%s7 + $0x4] sm:$0xf]
  %v175 = vld [vmem:[%s7 + $0x8] sm:$0xf]
  %v176 = vld [vmem:[%s7 + $0xc] sm:$0xf]
  %v177 = vld [vmem:[%s8] sm:$0x1]
  %v178 = vld [vmem:[%s1] sm:$0xff]
  %v179 = vld [vmem:[%s2] sm:$0xff]
  %v180 = vld [vmem:[#allocation2] sm:$0xff]
  %v181 = vpack.c.bf16 %v178, %v178
  %v186 = vunpack.c.l.b16 %v165
  %v187 = vunpack.c.l.b16 %v166
  %v188 = vunpack.c.l.b16 %v167
  %v189 = vunpack.c.l.b16 %v168
  %v190 = vpack.c.b16 %v187, %v186
  %v191 = vpack.c.b16 %v189, %v188
  %v195 = vsel %vm156, %v181, 0
  %197 = vmatprep.subr.bf16.mxu0 0
  %198 = vmatpush1.bf16.msra.mxu0 %v190
  %199 = vmatprep.subr.bf16.mxu0 0
  %200 = vmatpush1.bf16.msra.mxu0 %v191
  %201 = vmatprep.subr.bf16.mxu0 0
  %202 = vmatpush1.bf16.msra.mxu0 0
  %203 = vmatprep.subr.bf16.mxu0 0
  %204 = vmatpush1.bf16.msra.mxu0 0
  %205 = vmatprep.subr.bf16.mxu0 0
  %206 = vmatpush1.bf16.msra.mxu0 0
  %207 = vmatprep.subr.bf16.mxu0 0
  %208 = vmatpush1.bf16.msra.mxu0 0
  %209 = vmatprep.subr.bf16.mxu0 0
  %210 = vmatpush1.bf16.msra.mxu0 0
  %211 = vmatprep.subr.bf16.mxu0 0
  %212 = vmatpush1.bf16.msra.mxu0 0
  %213 = vmatprep.subr.bf16.mxu0 0
  %214 = vmatpush1.bf16.msra.mxu0 0
  %215 = vmatprep.subr.bf16.mxu0 0
  %216 = vmatpush1.bf16.msra.mxu0 0
  %217 = vmatprep.subr.bf16.mxu0 0
  %218 = vmatpush1.bf16.msra.mxu0 0
  %219 = vmatprep.subr.bf16.mxu0 0
  %220 = vmatpush1.bf16.msra.mxu0 0
  %221 = vmatprep.subr.bf16.mxu0 0
  %222 = vmatpush1.bf16.msra.mxu0 0
  %223 = vmatprep.subr.bf16.mxu0 0
  %224 = vmatpush1.bf16.msra.mxu0 0
  %225 = vmatprep.subr.bf16.mxu0 0
  %226 = vmatpush1.bf16.msra.mxu0 0
  %227 = vmatprep.subr.bf16.mxu0 0
  %228 = vmatpush1.bf16.msra.mxu0 0
  %229 = vmatprep.mubr.bf16.mxu0 0
  %230 = vmatmul.mubr.bf16.gmra.mrb[0].mxu0 %v195
  %v231 = vpop.f32.mrb[0].mxu0
  %v232 = vadd.f32 0.0, %v231
  %v233 = vpop.f32.mrb[0].mxu0
  %v234 = vpop.f32.mrb[0].mxu0
  %v235 = vpop.f32.mrb[0].mxu0
  %236 = vdwg.mxu0
  %v237 = vadd.f32 %v180, %v232
  %v238 = vtanh.pop %v237
  %v239 = vpack.c.bf16 %v238, %v238
  %v240 = vpack.c.bf16 %v179, %v179
  %v245 = vunpack.c.l.b16 %v173
  %v246 = vunpack.c.l.b16 %v174
  %v247 = vunpack.c.l.b16 %v175
  %v248 = vunpack.c.l.b16 %v176
  %v249 = vpack.c.b16 %v246, %v245
  %v250 = vpack.c.b16 %v248, %v247
  %v254 = vsel %vm156, %v240, 0
  %256 = vmatprep.subr.bf16.mxu0 0
  %257 = vmatpush1.bf16.msra.mxu0 %v249
  %258 = vmatprep.subr.bf16.mxu0 0
  %259 = vmatpush1.bf16.msra.mxu0 %v250
  %260 = vmatprep.subr.bf16.mxu0 0
  %261 = vmatpush1.bf16.msra.mxu0 0
  %262 = vmatprep.subr.bf16.mxu0 0
  %263 = vmatpush1.bf16.msra.mxu0 0
  %264 = vmatprep.subr.bf16.mxu0 0
  %265 = vmatpush1.bf16.msra.mxu0 0
  %266 = vmatprep.subr.bf16.mxu0 0
  %267 = vmatpush1.bf16.msra.mxu0 0
  %268 = vmatprep.subr.bf16.mxu0 0
  %269 = vmatpush1.bf16.msra.mxu0 0
  %270 = vmatprep.subr.bf16.mxu0 0
  %271 = vmatpush1.bf16.msra.mxu0 0
  %272 = vmatprep.subr.bf16.mxu0 0
  %273 = vmatpush1.bf16.msra.mxu0 0
  %274 = vmatprep.subr.bf16.mxu0 0
  %275 = vmatpush1.bf16.msra.mxu0 0
  %276 = vmatprep.subr.bf16.mxu0 0
  %277 = vmatpush1.bf16.msra.mxu0 0
  %278 = vmatprep.subr.bf16.mxu0 0
  %279 = vmatpush1.bf16.msra.mxu0 0
  %280 = vmatprep.subr.bf16.mxu0 0
  %281 = vmatpush1.bf16.msra.mxu0 0
  %282 = vmatprep.subr.bf16.mxu0 0
  %283 = vmatpush1.bf16.msra.mxu0 0
  %284 = vmatprep.subr.bf16.mxu0 0
  %285 = vmatpush1.bf16.msra.mxu0 0
  %286 = vmatprep.subr.bf16.mxu0 0
  %287 = vmatpush1.bf16.msra.mxu0 0
  %288 = vmatprep.mubr.bf16.mxu0 0
  %289 = vmatmul.mubr.bf16.gmra.mrb[0].mxu0 %v254
  %v290 = vpop.f32.mrb[0].mxu0
  %v291 = vadd.f32 0.0, %v290
  %v292 = vpop.f32.mrb[0].mxu0
  %v293 = vpop.f32.mrb[0].mxu0
  %v294 = vpop.f32.mrb[0].mxu0
  %295 = vdwg.mxu0
  %v300 = vunpack.c.l.b16 %v169
  %v301 = vunpack.c.l.b16 %v170
  %v302 = vunpack.c.l.b16 %v171
  %v303 = vunpack.c.l.b16 %v172
  %v304 = vpack.c.b16 %v301, %v300
  %v305 = vpack.c.b16 %v303, %v302
  %v309 = vsel %vm156, %v239, 0
  %311 = vmatprep.subr.bf16.mxu0 0
  %312 = vmatpush1.bf16.msra.mxu0 %v304
  %313 = vmatprep.subr.bf16.mxu0 0
  %314 = vmatpush1.bf16.msra.mxu0 %v305
  %315 = vmatprep.subr.bf16.mxu0 0
  %316 = vmatpush1.bf16.msra.mxu0 0
  %317 = vmatprep.subr.bf16.mxu0 0
  %318 = vmatpush1.bf16.msra.mxu0 0
  %319 = vmatprep.subr.bf16.mxu0 0
  %320 = vmatpush1.bf16.msra.mxu0 0
  %321 = vmatprep.subr.bf16.mxu0 0
  %322 = vmatpush1.bf16.msra.mxu0 0
  %323 = vmatprep.subr.bf16.mxu0 0
  %324 = vmatpush1.bf16.msra.mxu0 0
  %325 = vmatprep.subr.bf16.mxu0 0
  %326 = vmatpush1.bf16.msra.mxu0 0
  %327 = vmatprep.subr.bf16.mxu0 0
  %328 = vmatpush1.bf16.msra.mxu0 0
  %329 = vmatprep.subr.bf16.mxu0 0
  %330 = vmatpush1.bf16.msra.mxu0 0
  %331 = vmatprep.subr.bf16.mxu0 0
  %332 = vmatpush1.bf16.msra.mxu0 0
  %333 = vmatprep.subr.bf16.mxu0 0
  %334 = vmatpush1.bf16.msra.mxu0 0
  %335 = vmatprep.subr.bf16.mxu0 0
  %336 = vmatpush1.bf16.msra.mxu0 0
  %337 = vmatprep.subr.bf16.mxu0 0
  %338 = vmatpush1.bf16.msra.mxu0 0
  %339 = vmatprep.subr.bf16.mxu0 0
  %340 = vmatpush1.bf16.msra.mxu0 0
  %341 = vmatprep.subr.bf16.mxu0 0
  %342 = vmatpush1.bf16.msra.mxu0 0
  %343 = vmatprep.mubr.bf16.mxu0 0
  %344 = vmatmul.mubr.bf16.gmra.mrb[0].mxu0 %v309
  %v345 = vpop.f32.mrb[0].mxu0
  %v346 = vadd.f32 %v291, %v345
  %v347 = vpop.f32.mrb[0].mxu0
  %v348 = vpop.f32.mrb[0].mxu0
  %v349 = vpop.f32.mrb[0].mxu0
  %350 = vdwg.mxu0
  %v352 = vlaneseq
  %v353 = vshrl.u32 %v352, 7
  %v354 = vsub.s32 0, %v353
  %v355 = vrot.slane %v177, %v354
  %v357 = vadd.f32 %v346, %v355
  %v358 = vtanh.pop %v357
  %s359 = scalar_lea.vmem [#allocation2], 8
  %v360 = vld [vmem:[%s359] sm:$0xff]
  %361 = vmatprep.subr.bf16.mxu0 0
  %362 = vmatpush1.bf16.msra.mxu0 %v190
  %363 = vmatprep.subr.bf16.mxu0 0
  %364 = vmatpush1.bf16.msra.mxu0 %v191
  %365 = vmatprep.subr.bf16.mxu0 0
  %366 = vmatpush1.bf16.msra.mxu0 0
  %367 = vmatprep.subr.bf16.mxu0 0
  %368 = vmatpush1.bf16.msra.mxu0 0
  %369 = vmatprep.subr.bf16.mxu0 0
  %370 = vmatpush1.bf16.msra.mxu0 0
  %371 = vmatprep.subr.bf16.mxu0 0
  %372 = vmatpush1.bf16.msra.mxu0 0
  %373 = vmatprep.subr.bf16.mxu0 0
  %374 = vmatpush1.bf16.msra.mxu0 0
  %375 = vmatprep.subr.bf16.mxu0 0
  %376 = vmatpush1.bf16.msra.mxu0 0
  %377 = vmatprep.subr.bf16.mxu0 0
  %378 = vmatpush1.bf16.msra.mxu0 0
  %379 = vmatprep.subr.bf16.mxu0 0
  %380 = vmatpush1.bf16.msra.mxu0 0
  %381 = vmatprep.subr.bf16.mxu0 0
  %382 = vmatpush1.bf16.msra.mxu0 0
  %383 = vmatprep.subr.bf16.mxu0 0
  %384 = vmatpush1.bf16.msra.mxu0 0
  %385 = vmatprep.subr.bf16.mxu0 0
  %386 = vmatpush1.bf16.msra.mxu0 0
  %387 = vmatprep.subr.bf16.mxu0 0
  %388 = vmatpush1.bf16.msra.mxu0 0
  %389 = vmatprep.subr.bf16.mxu0 0
  %390 = vmatpush1.bf16.msra.mxu0 0
  %391 = vmatprep.subr.bf16.mxu0 0
  %392 = vmatpush1.bf16.msra.mxu0 0
  %393 = vmatprep.mubr.bf16.mxu0 0
  %394 = vmatmul.mubr.bf16.gmra.mrb[0].mxu0 %v309
  %v395 = vpop.f32.mrb[0].mxu0
  %v396 = vadd.f32 0.0, %v395
  %v397 = vpop.f32.mrb[0].mxu0
  %v398 = vpop.f32.mrb[0].mxu0
  %v399 = vpop.f32.mrb[0].mxu0
  %400 = vdwg.mxu0
  %v401 = vadd.f32 %v360, %v396
  %v402 = vtanh.pop %v401
  %v403 = vpack.c.bf16 %v402, %v402
  %v404 = vpack.c.bf16 %v358, %v358
  %v406 = vsel %vm156, %v404, 0
  %408 = vmatprep.subr.bf16.mxu0 0
  %409 = vmatpush1.bf16.msra.mxu0 %v249
  %410 = vmatprep.subr.bf16.mxu0 0
  %411 = vmatpush1.bf16.msra.mxu0 %v250
  %412 = vmatprep.subr.bf16.mxu0 0
  %413 = vmatpush1.bf16.msra.mxu0 0
  %414 = vmatprep.subr.bf16.mxu0 0
  %415 = vmatpush1.bf16.msra.mxu0 0
  %416 = vmatprep.subr.bf16.mxu0 0
  %417 = vmatpush1.bf16.msra.mxu0 0
  %418 = vmatprep.subr.bf16.mxu0 0
  %419 = vmatpush1.bf16.msra.mxu0 0
  %420 = vmatprep.subr.bf16.mxu0 0
  %421 = vmatpush1.bf16.msra.mxu0 0
  %422 = vmatprep.subr.bf16.mxu0 0
  %423 = vmatpush1.bf16.msra.mxu0 0
  %424 = vmatprep.subr.bf16.mxu0 0
  %425 = vmatpush1.bf16.msra.mxu0 0
  %426 = vmatprep.subr.bf16.mxu0 0
  %427 = vmatpush1.bf16.msra.mxu0 0
  %428 = vmatprep.subr.bf16.mxu0 0
  %429 = vmatpush1.bf16.msra.mxu0 0
  %430 = vmatprep.subr.bf16.mxu0 0
  %431 = vmatpush1.bf16.msra.mxu0 0
  %432 = vmatprep.subr.bf16.mxu0 0
  %433 = vmatpush1.bf16.msra.mxu0 0
  %434 = vmatprep.subr.bf16.mxu0 0
  %435 = vmatpush1.bf16.msra.mxu0 0
  %436 = vmatprep.subr.bf16.mxu0 0
  %437 = vmatpush1.bf16.msra.mxu0 0
  %438 = vmatprep.subr.bf16.mxu0 0
  %439 = vmatpush1.bf16.msra.mxu0 0
  %440 = vmatprep.mubr.bf16.mxu0 0
  %441 = vmatmul.mubr.bf16.gmra.mrb[0].mxu0 %v406
  %v442 = vpop.f32.mrb[0].mxu0
  %v443 = vadd.f32 0.0, %v442
  %v444 = vpop.f32.mrb[0].mxu0
  %v445 = vpop.f32.mrb[0].mxu0
  %v446 = vpop.f32.mrb[0].mxu0
  %447 = vdwg.mxu0
  %v449 = vsel %vm156, %v403, 0
  %451 = vmatprep.subr.bf16.mxu0 0
  %452 = vmatpush1.bf16.msra.mxu0 %v304
  %453 = vmatprep.subr.bf16.mxu0 0
  %454 = vmatpush1.bf16.msra.mxu0 %v305
  %455 = vmatprep.subr.bf16.mxu0 0
  %456 = vmatpush1.bf16.msra.mxu0 0
  %457 = vmatprep.subr.bf16.mxu0 0
  %458 = vmatpush1.bf16.msra.mxu0 0
  %459 = vmatprep.subr.bf16.mxu0 0
  %460 = vmatpush1.bf16.msra.mxu0 0
  %461 = vmatprep.subr.bf16.mxu0 0
  %462 = vmatpush1.bf16.msra.mxu0 0
  %463 = vmatprep.subr.bf16.mxu0 0
  %464 = vmatpush1.bf16.msra.mxu0 0
  %465 = vmatprep.subr.bf16.mxu0 0
  %466 = vmatpush1.bf16.msra.mxu0 0
  %467 = vmatprep.subr.bf16.mxu0 0
  %468 = vmatpush1.bf16.msra.mxu0 0
  %469 = vmatprep.subr.bf16.mxu0 0
  %470 = vmatpush1.bf16.msra.mxu0 0
  %471 = vmatprep.subr.bf16.mxu0 0
  %472 = vmatpush1.bf16.msra.mxu0 0
  %473 = vmatprep.subr.bf16.mxu0 0
  %474 = vmatpush1.bf16.msra.mxu0 0
  %475 = vmatprep.subr.bf16.mxu0 0
  %476 = vmatpush1.bf16.msra.mxu0 0
  %477 = vmatprep.subr.bf16.mxu0 0
  %478 = vmatpush1.bf16.msra.mxu0 0
  %479 = vmatprep.subr.bf16.mxu0 0
  %480 = vmatpush1.bf16.msra.mxu0 0
  %481 = vmatprep.subr.bf16.mxu0 0
  %482 = vmatpush1.bf16.msra.mxu0 0
  %483 = vmatprep.mubr.bf16.mxu0 0
  %484 = vmatmul.mubr.bf16.gmra.mrb[0].mxu0 %v449
  %v485 = vpop.f32.mrb[0].mxu0
  %v486 = vadd.f32 %v443, %v485
  %v487 = vpop.f32.mrb[0].mxu0
  %v488 = vpop.f32.mrb[0].mxu0
  %v489 = vpop.f32.mrb[0].mxu0
  %490 = vdwg.mxu0
  %v491 = vadd.f32 %v486, %v355
  %v492 = vtanh.pop %v491
  %s493 = scalar_lea.vmem [#allocation2], 16
  %v494 = vld [vmem:[%s493] sm:$0xff]
  %495 = vmatprep.subr.bf16.mxu0 0
  %496 = vmatpush1.bf16.msra.mxu0 %v190
  %497 = vmatprep.subr.bf16.mxu0 0
  %498 = vmatpush1.bf16.msra.mxu0 %v191
  %499 = vmatprep.subr.bf16.mxu0 0
  %500 = vmatpush1.bf16.msra.mxu0 0
  %501 = vmatprep.subr.bf16.mxu0 0
  %502 = vmatpush1.bf16.msra.mxu0 0
  %503 = vmatprep.subr.bf16.mxu0 0
  %504 = vmatpush1.bf16.msra.mxu0 0
  %505 = vmatprep.subr.bf16.mxu0 0
  %506 = vmatpush1.bf16.msra.mxu0 0
  %507 = vmatprep.subr.bf16.mxu0 0
  %508 = vmatpush1.bf16.msra.mxu0 0
  %509 = vmatprep.subr.bf16.mxu0 0
  %510 = vmatpush1.bf16.msra.mxu0 0
  %511 = vmatprep.subr.bf16.mxu0 0
  %512 = vmatpush1.bf16.msra.mxu0 0
  %513 = vmatprep.subr.bf16.mxu0 0
  %514 = vmatpush1.bf16.msra.mxu0 0
  %515 = vmatprep.subr.bf16.mxu0 0
  %516 = vmatpush1.bf16.msra.mxu0 0
  %517 = vmatprep.subr.bf16.mxu0 0
  %518 = vmatpush1.bf16.msra.mxu0 0
  %519 = vmatprep.subr.bf16.mxu0 0
  %520 = vmatpush1.bf16.msra.mxu0 0
  %521 = vmatprep.subr.bf16.mxu0 0
  %522 = vmatpush1.bf16.msra.mxu0 0
  %523 = vmatprep.subr.bf16.mxu0 0
  %524 = vmatpush1.bf16.msra.mxu0 0
  %525 = vmatprep.subr.bf16.mxu0 0
  %526 = vmatpush1.bf16.msra.mxu0 0
  %527 = vmatprep.mubr.bf16.mxu0 0
  %528 = vmatmul.mubr.bf16.gmra.mrb[0].mxu0 %v449
  %v529 = vpop.f32.mrb[0].mxu0
  %v530 = vadd.f32 0.0, %v529
  %v531 = vpop.f32.mrb[0].mxu0
  %v532 = vpop.f32.mrb[0].mxu0
  %v533 = vpop.f32.mrb[0].mxu0
  %534 = vdwg.mxu0
  %v535 = vadd.f32 %v494, %v530
  %v536 = vtanh.pop %v535
  %v537 = vpack.c.bf16 %v536, %v536
  %v538 = vpack.c.bf16 %v492, %v492
  %v540 = vsel %vm156, %v538, 0
  %542 = vmatprep.subr.bf16.mxu0 0
  %543 = vmatpush1.bf16.msra.mxu0 %v249
  %544 = vmatprep.subr.bf16.mxu0 0
  %545 = vmatpush1.bf16.msra.mxu0 %v250
  %546 = vmatprep.subr.bf16.mxu0 0
  %547 = vmatpush1.bf16.msra.mxu0 0
  %548 = vmatprep.subr.bf16.mxu0 0
  %549 = vmatpush1.bf16.msra.mxu0 0
  %550 = vmatprep.subr.bf16.mxu0 0
  %551 = vmatpush1.bf16.msra.mxu0 0
  %552 = vmatprep.subr.bf16.mxu0 0
  %553 = vmatpush1.bf16.msra.mxu0 0
  %554 = vmatprep.subr.bf16.mxu0 0
  %555 = vmatpush1.bf16.msra.mxu0 0
  %556 = vmatprep.subr.bf16.mxu0 0
  %557 = vmatpush1.bf16.msra.mxu0 0
  %558 = vmatprep.subr.bf16.mxu0 0
  %559 = vmatpush1.bf16.msra.mxu0 0
  %560 = vmatprep.subr.bf16.mxu0 0
  %561 = vmatpush1.bf16.msra.mxu0 0
  %562 = vmatprep.subr.bf16.mxu0 0
  %563 = vmatpush1.bf16.msra.mxu0 0
  %564 = vmatprep.subr.bf16.mxu0 0
  %565 = vmatpush1.bf16.msra.mxu0 0
  %566 = vmatprep.subr.bf16.mxu0 0
  %567 = vmatpush1.bf16.msra.mxu0 0
  %568 = vmatprep.subr.bf16.mxu0 0
  %569 = vmatpush1.bf16.msra.mxu0 0
  %570 = vmatprep.subr.bf16.mxu0 0
  %571 = vmatpush1.bf16.msra.mxu0 0
  %572 = vmatprep.subr.bf16.mxu0 0
  %573 = vmatpush1.bf16.msra.mxu0 0
  %574 = vmatprep.mubr.bf16.mxu0 0
  %575 = vmatmul.mubr.bf16.gmra.mrb[0].mxu0 %v540
  %v576 = vpop.f32.mrb[0].mxu0
  %v577 = vadd.f32 0.0, %v576
  %v578 = vpop.f32.mrb[0].mxu0
  %v579 = vpop.f32.mrb[0].mxu0
  %v580 = vpop.f32.mrb[0].mxu0
  %581 = vdwg.mxu0
  %v583 = vsel %vm156, %v537, 0
  %585 = vmatprep.subr.bf16.mxu0 0
  %586 = vmatpush1.bf16.msra.mxu0 %v304
  %587 = vmatprep.subr.bf16.mxu0 0
  %588 = vmatpush1.bf16.msra.mxu0 %v305
  %589 = vmatprep.subr.bf16.mxu0 0
  %590 = vmatpush1.bf16.msra.mxu0 0
  %591 = vmatprep.subr.bf16.mxu0 0
  %592 = vmatpush1.bf16.msra.mxu0 0
  %593 = vmatprep.subr.bf16.mxu0 0
  %594 = vmatpush1.bf16.msra.mxu0 0
  %595 = vmatprep.subr.bf16.mxu0 0
  %596 = vmatpush1.bf16.msra.mxu0 0
  %597 = vmatprep.subr.bf16.mxu0 0
  %598 = vmatpush1.bf16.msra.mxu0 0
  %599 = vmatprep.subr.bf16.mxu0 0
  %600 = vmatpush1.bf16.msra.mxu0 0
  %601 = vmatprep.subr.bf16.mxu0 0
  %602 = vmatpush1.bf16.msra.mxu0 0
  %603 = vmatprep.subr.bf16.mxu0 0
  %604 = vmatpush1.bf16.msra.mxu0 0
  %605 = vmatprep.subr.bf16.mxu0 0
  %606 = vmatpush1.bf16.msra.mxu0 0
  %607 = vmatprep.subr.bf16.mxu0 0
  %608 = vmatpush1.bf16.msra.mxu0 0
  %609 = vmatprep.subr.bf16.mxu0 0
  %610 = vmatpush1.bf16.msra.mxu0 0
  %611 = vmatprep.subr.bf16.mxu0 0
  %612 = vmatpush1.bf16.msra.mxu0 0
  %613 = vmatprep.subr.bf16.mxu0 0
  %614 = vmatpush1.bf16.msra.mxu0 0
  %615 = vmatprep.subr.bf16.mxu0 0
  %616 = vmatpush1.bf16.msra.mxu0 0
  %617 = vmatprep.mubr.bf16.mxu0 0
  %618 = vmatmul.mubr.bf16.gmra.mrb[0].mxu0 %v583
  %v619 = vpop.f32.mrb[0].mxu0
  %v620 = vadd.f32 %v577, %v619
  %v621 = vpop.f32.mrb[0].mxu0
  %v622 = vpop.f32.mrb[0].mxu0
  %v623 = vpop.f32.mrb[0].mxu0
  %624 = vdwg.mxu0
  %v625 = vadd.f32 %v620, %v355
  %v626 = vtanh.pop %v625
  %s627 = scalar_lea.vmem [#allocation2], 24
  %v628 = vld [vmem:[%s627] sm:$0xff]
  %629 = vmatprep.subr.bf16.mxu0 0
  %630 = vmatpush1.bf16.msra.mxu0 %v190
  %631 = vmatprep.subr.bf16.mxu0 0
  %632 = vmatpush1.bf16.msra.mxu0 %v191
  %633 = vmatprep.subr.bf16.mxu0 0
  %634 = vmatpush1.bf16.msra.mxu0 0
  %635 = vmatprep.subr.bf16.mxu0 0
  %636 = vmatpush1.bf16.msra.mxu0 0
  %637 = vmatprep.subr.bf16.mxu0 0
  %638 = vmatpush1.bf16.msra.mxu0 0
  %639 = vmatprep.subr.bf16.mxu0 0
  %640 = vmatpush1.bf16.msra.mxu0 0
  %641 = vmatprep.subr.bf16.mxu0 0
  %642 = vmatpush1.bf16.msra.mxu0 0
  %643 = vmatprep.subr.bf16.mxu0 0
  %644 = vmatpush1.bf16.msra.mxu0 0
  %645 = vmatprep.subr.bf16.mxu0 0
  %646 = vmatpush1.bf16.msra.mxu0 0
  %647 = vmatprep.subr.bf16.mxu0 0
  %648 = vmatpush1.bf16.msra.mxu0 0
  %649 = vmatprep.subr.bf16.mxu0 0
  %650 = vmatpush1.bf16.msra.mxu0 0
  %651 = vmatprep.subr.bf16.mxu0 0
  %652 = vmatpush1.bf16.msra.mxu0 0
  %653 = vmatprep.subr.bf16.mxu0 0
  %654 = vmatpush1.bf16.msra.mxu0 0
  %655 = vmatprep.subr.bf16.mxu0 0
  %656 = vmatpush1.bf16.msra.mxu0 0
  %657 = vmatprep.subr.bf16.mxu0 0
  %658 = vmatpush1.bf16.msra.mxu0 0
  %659 = vmatprep.subr.bf16.mxu0 0
  %660 = vmatpush1.bf16.msra.mxu0 0
  %661 = vmatprep.mubr.bf16.mxu0 0
  %662 = vmatmul.mubr.bf16.gmra.mrb[0].mxu0 %v583
  %v663 = vpop.f32.mrb[0].mxu0
  %v664 = vadd.f32 0.0, %v663
  %v665 = vpop.f32.mrb[0].mxu0
  %v666 = vpop.f32.mrb[0].mxu0
  %v667 = vpop.f32.mrb[0].mxu0
  %668 = vdwg.mxu0
  %v669 = vadd.f32 %v628, %v664
  %v670 = vtanh.pop %v669
  %v671 = vpack.c.bf16 %v670, %v670
  %v672 = vpack.c.bf16 %v626, %v626
  %v674 = vsel %vm156, %v672, 0
  %676 = vmatprep.subr.bf16.mxu0 0
  %677 = vmatpush1.bf16.msra.mxu0 %v249
  %678 = vmatprep.subr.bf16.mxu0 0
  %679 = vmatpush1.bf16.msra.mxu0 %v250
  %680 = vmatprep.subr.bf16.mxu0 0
  %681 = vmatpush1.bf16.msra.mxu0 0
  %682 = vmatprep.subr.bf16.mxu0 0
  %683 = vmatpush1.bf16.msra.mxu0 0
  %684 = vmatprep.subr.bf16.mxu0 0
  %685 = vmatpush1.bf16.msra.mxu0 0
  %686 = vmatprep.subr.bf16.mxu0 0
  %687 = vmatpush1.bf16.msra.mxu0 0
  %688 = vmatprep.subr.bf16.mxu0 0
  %689 = vmatpush1.bf16.msra.mxu0 0
  %690 = vmatprep.subr.bf16.mxu0 0
  %691 = vmatpush1.bf16.msra.mxu0 0
  %692 = vmatprep.subr.bf16.mxu0 0
  %693 = vmatpush1.bf16.msra.mxu0 0
  %694 = vmatprep.subr.bf16.mxu0 0
  %695 = vmatpush1.bf16.msra.mxu0 0
  %696 = vmatprep.subr.bf16.mxu0 0
  %697 = vmatpush1.bf16.msra.mxu0 0
  %698 = vmatprep.subr.bf16.mxu0 0
  %699 = vmatpush1.bf16.msra.mxu0 0
  %700 = vmatprep.subr.bf16.mxu0 0
  %701 = vmatpush1.bf16.msra.mxu0 0
  %702 = vmatprep.subr.bf16.mxu0 0
  %703 = vmatpush1.bf16.msra.mxu0 0
  %704 = vmatprep.subr.bf16.mxu0 0
  %705 = vmatpush1.bf16.msra.mxu0 0
  %706 = vmatprep.subr.bf16.mxu0 0
  %707 = vmatpush1.bf16.msra.mxu0 0
  %708 = vmatprep.mubr.bf16.mxu0 0
  %709 = vmatmul.mubr.bf16.gmra.mrb[0].mxu0 %v674
  %v710 = vpop.f32.mrb[0].mxu0
  %v711 = vadd.f32 0.0, %v710
  %v712 = vpop.f32.mrb[0].mxu0
  %v713 = vpop.f32.mrb[0].mxu0
  %v714 = vpop.f32.mrb[0].mxu0
  %715 = vdwg.mxu0
  %v717 = vsel %vm156, %v671, 0
  %719 = vmatprep.subr.bf16.mxu0 0
  %720 = vmatpush1.bf16.msra.mxu0 %v304
  %721 = vmatprep.subr.bf16.mxu0 0
  %722 = vmatpush1.bf16.msra.mxu0 %v305
  %723 = vmatprep.subr.bf16.mxu0 0
  %724 = vmatpush1.bf16.msra.mxu0 0
  %725 = vmatprep.subr.bf16.mxu0 0
  %726 = vmatpush1.bf16.msra.mxu0 0
  %727 = vmatprep.subr.bf16.mxu0 0
  %728 = vmatpush1.bf16.msra.mxu0 0
  %729 = vmatprep.subr.bf16.mxu0 0
  %730 = vmatpush1.bf16.msra.mxu0 0
  %731 = vmatprep.subr.bf16.mxu0 0
  %732 = vmatpush1.bf16.msra.mxu0 0
  %733 = vmatprep.subr.bf16.mxu0 0
  %734 = vmatpush1.bf16.msra.mxu0 0
  %735 = vmatprep.subr.bf16.mxu0 0
  %736 = vmatpush1.bf16.msra.mxu0 0
  %737 = vmatprep.subr.bf16.mxu0 0
  %738 = vmatpush1.bf16.msra.mxu0 0
  %739 = vmatprep.subr.bf16.mxu0 0
  %740 = vmatpush1.bf16.msra.mxu0 0
  %741 = vmatprep.subr.bf16.mxu0 0
  %742 = vmatpush1.bf16.msra.mxu0 0
  %743 = vmatprep.subr.bf16.mxu0 0
  %744 = vmatpush1.bf16.msra.mxu0 0
  %745 = vmatprep.subr.bf16.mxu0 0
  %746 = vmatpush1.bf16.msra.mxu0 0
  %747 = vmatprep.subr.bf16.mxu0 0
  %748 = vmatpush1.bf16.msra.mxu0 0
  %749 = vmatprep.subr.bf16.mxu0 0
  %750 = vmatpush1.bf16.msra.mxu0 0
  %751 = vmatprep.mubr.bf16.mxu0 0
  %752 = vmatmul.mubr.bf16.gmra.mrb[0].mxu0 %v717
  %v753 = vpop.f32.mrb[0].mxu0
  %v754 = vadd.f32 %v711, %v753
  %v755 = vpop.f32.mrb[0].mxu0
  %v756 = vpop.f32.mrb[0].mxu0
  %v757 = vpop.f32.mrb[0].mxu0
  %758 = vdwg.mxu0
  %v759 = vadd.f32 %v754, %v355
  %v760 = vtanh.pop %v759
  %s761 = scalar_lea.vmem [#allocation2], 32
  %v762 = vld [vmem:[%s761] sm:$0xff]
  %763 = vmatprep.subr.bf16.mxu0 0
  %764 = vmatpush1.bf16.msra.mxu0 %v190
  %765 = vmatprep.subr.bf16.mxu0 0
  %766 = vmatpush1.bf16.msra.mxu0 %v191
  %767 = vmatprep.subr.bf16.mxu0 0
  %768 = vmatpush1.bf16.msra.mxu0 0
  %769 = vmatprep.subr.bf16.mxu0 0
  %770 = vmatpush1.bf16.msra.mxu0 0
  %771 = vmatprep.subr.bf16.mxu0 0
  %772 = vmatpush1.bf16.msra.mxu0 0
  %773 = vmatprep.subr.bf16.mxu0 0
  %774 = vmatpush1.bf16.msra.mxu0 0
  %775 = vmatprep.subr.bf16.mxu0 0
  %776 = vmatpush1.bf16.msra.mxu0 0
  %777 = vmatprep.subr.bf16.mxu0 0
  %778 = vmatpush1.bf16.msra.mxu0 0
  %779 = vmatprep.subr.bf16.mxu0 0
  %780 = vmatpush1.bf16.msra.mxu0 0
  %781 = vmatprep.subr.bf16.mxu0 0
  %782 = vmatpush1.bf16.msra.mxu0 0
  %783 = vmatprep.subr.bf16.mxu0 0
  %784 = vmatpush1.bf16.msra.mxu0 0
  %785 = vmatprep.subr.bf16.mxu0 0
  %786 = vmatpush1.bf16.msra.mxu0 0
  %787 = vmatprep.subr.bf16.mxu0 0
  %788 = vmatpush1.bf16.msra.mxu0 0
  %789 = vmatprep.subr.bf16.mxu0 0
  %790 = vmatpush1.bf16.msra.mxu0 0
  %791 = vmatprep.subr.bf16.mxu0 0
  %792 = vmatpush1.bf16.msra.mxu0 0
  %793 = vmatprep.subr.bf16.mxu0 0
  %794 = vmatpush1.bf16.msra.mxu0 0
  %795 = vmatprep.mubr.bf16.mxu0 0
  %796 = vmatmul.mubr.bf16.gmra.mrb[0].mxu0 %v717
  %v797 = vpop.f32.mrb[0].mxu0
  %v798 = vadd.f32 0.0, %v797
  %v799 = vpop.f32.mrb[0].mxu0
  %v800 = vpop.f32.mrb[0].mxu0
  %v801 = vpop.f32.mrb[0].mxu0
  %802 = vdwg.mxu0
  %v803 = vadd.f32 %v762, %v798
  %v804 = vtanh.pop %v803
  %v805 = vpack.c.bf16 %v804, %v804
  %v806 = vpack.c.bf16 %v760, %v760
  %v808 = vsel %vm156, %v806, 0
  %810 = vmatprep.subr.bf16.mxu0 0
  %811 = vmatpush1.bf16.msra.mxu0 %v249
  %812 = vmatprep.subr.bf16.mxu0 0
  %813 = vmatpush1.bf16.msra.mxu0 %v250
  %814 = vmatprep.subr.bf16.mxu0 0
  %815 = vmatpush1.bf16.msra.mxu0 0
  %816 = vmatprep.subr.bf16.mxu0 0
  %817 = vmatpush1.bf16.msra.mxu0 0
  %818 = vmatprep.subr.bf16.mxu0 0
  %819 = vmatpush1.bf16.msra.mxu0 0
  %820 = vmatprep.subr.bf16.mxu0 0
  %821 = vmatpush1.bf16.msra.mxu0 0
  %822 = vmatprep.subr.bf16.mxu0 0
  %823 = vmatpush1.bf16.msra.mxu0 0
  %824 = vmatprep.subr.bf16.mxu0 0
  %825 = vmatpush1.bf16.msra.mxu0 0
  %826 = vmatprep.subr.bf16.mxu0 0
  %827 = vmatpush1.bf16.msra.mxu0 0
  %828 = vmatprep.subr.bf16.mxu0 0
  %829 = vmatpush1.bf16.msra.mxu0 0
  %830 = vmatprep.subr.bf16.mxu0 0
  %831 = vmatpush1.bf16.msra.mxu0 0
  %832 = vmatprep.subr.bf16.mxu0 0
  %833 = vmatpush1.bf16.msra.mxu0 0
  %834 = vmatprep.subr.bf16.mxu0 0
  %835 = vmatpush1.bf16.msra.mxu0 0
  %836 = vmatprep.subr.bf16.mxu0 0
  %837 = vmatpush1.bf16.msra.mxu0 0
  %838 = vmatprep.subr.bf16.mxu0 0
  %839 = vmatpush1.bf16.msra.mxu0 0
  %840 = vmatprep.subr.bf16.mxu0 0
  %841 = vmatpush1.bf16.msra.mxu0 0
  %842 = vmatprep.mubr.bf16.mxu0 0
  %843 = vmatmul.mubr.bf16.gmra.mrb[0].mxu0 %v808
  %v844 = vpop.f32.mrb[0].mxu0
  %v845 = vadd.f32 0.0, %v844
  %v846 = vpop.f32.mrb[0].mxu0
  %v847 = vpop.f32.mrb[0].mxu0
  %v848 = vpop.f32.mrb[0].mxu0
  %849 = vdwg.mxu0
  %v851 = vsel %vm156, %v805, 0
  %853 = vmatprep.subr.bf16.mxu0 0
  %854 = vmatpush1.bf16.msra.mxu0 %v304
  %855 = vmatprep.subr.bf16.mxu0 0
  %856 = vmatpush1.bf16.msra.mxu0 %v305
  %857 = vmatprep.subr.bf16.mxu0 0
  %858 = vmatpush1.bf16.msra.mxu0 0
  %859 = vmatprep.subr.bf16.mxu0 0
  %860 = vmatpush1.bf16.msra.mxu0 0
  %861 = vmatprep.subr.bf16.mxu0 0
  %862 = vmatpush1.bf16.msra.mxu0 0
  %863 = vmatprep.subr.bf16.mxu0 0
  %864 = vmatpush1.bf16.msra.mxu0 0
  %865 = vmatprep.subr.bf16.mxu0 0
  %866 = vmatpush1.bf16.msra.mxu0 0
  %867 = vmatprep.subr.bf16.mxu0 0
  %868 = vmatpush1.bf16.msra.mxu0 0
  %869 = vmatprep.subr.bf16.mxu0 0
  %870 = vmatpush1.bf16.msra.mxu0 0
  %871 = vmatprep.subr.bf16.mxu0 0
  %872 = vmatpush1.bf16.msra.mxu0 0
  %873 = vmatprep.subr.bf16.mxu0 0
  %874 = vmatpush1.bf16.msra.mxu0 0
  %875 = vmatprep.subr.bf16.mxu0 0
  %876 = vmatpush1.bf16.msra.mxu0 0
  %877 = vmatprep.subr.bf16.mxu0 0
  %878 = vmatpush1.bf16.msra.mxu0 0
  %879 = vmatprep.subr.bf16.mxu0 0
  %880 = vmatpush1.bf16.msra.mxu0 0
  %881 = vmatprep.subr.bf16.mxu0 0
  %882 = vmatpush1.bf16.msra.mxu0 0
  %883 = vmatprep.subr.bf16.mxu0 0
  %884 = vmatpush1.bf16.msra.mxu0 0
  %885 = vmatprep.mubr.bf16.mxu0 0
  %886 = vmatmul.mubr.bf16.gmra.mrb[0].mxu0 %v851
  %v887 = vpop.f32.mrb[0].mxu0
  %v888 = vadd.f32 %v845, %v887
  %v889 = vpop.f32.mrb[0].mxu0
  %v890 = vpop.f32.mrb[0].mxu0
  %v891 = vpop.f32.mrb[0].mxu0
  %892 = vdwg.mxu0
  %v893 = vadd.f32 %v888, %v355
  %v894 = vtanh.pop %v893
  %s895 = scalar_lea.vmem [#allocation2], 40
  %v896 = vld [vmem:[%s895] sm:$0xff]
  %897 = vmatprep.subr.bf16.mxu0 0
  %898 = vmatpush1.bf16.msra.mxu0 %v190
  %899 = vmatprep.subr.bf16.mxu0 0
  %900 = vmatpush1.bf16.msra.mxu0 %v191
  %901 = vmatprep.subr.bf16.mxu0 0
  %902 = vmatpush1.bf16.msra.mxu0 0
  %903 = vmatprep.subr.bf16.mxu0 0
  %904 = vmatpush1.bf16.msra.mxu0 0
  %905 = vmatprep.subr.bf16.mxu0 0
  %906 = vmatpush1.bf16.msra.mxu0 0
  %907 = vmatprep.subr.bf16.mxu0 0
  %908 = vmatpush1.bf16.msra.mxu0 0
  %909 = vmatprep.subr.bf16.mxu0 0
  %910 = vmatpush1.bf16.msra.mxu0 0
  %911 = vmatprep.subr.bf16.mxu0 0
  %912 = vmatpush1.bf16.msra.mxu0 0
  %913 = vmatprep.subr.bf16.mxu0 0
  %914 = vmatpush1.bf16.msra.mxu0 0
  %915 = vmatprep.subr.bf16.mxu0 0
  %916 = vmatpush1.bf16.msra.mxu0 0
  %917 = vmatprep.subr.bf16.mxu0 0
  %918 = vmatpush1.bf16.msra.mxu0 0
  %919 = vmatprep.subr.bf16.mxu0 0
  %920 = vmatpush1.bf16.msra.mxu0 0
  %921 = vmatprep.subr.bf16.mxu0 0
  %922 = vmatpush1.bf16.msra.mxu0 0
  %923 = vmatprep.subr.bf16.mxu0 0
  %924 = vmatpush1.bf16.msra.mxu0 0
  %925 = vmatprep.subr.bf16.mxu0 0
  %926 = vmatpush1.bf16.msra.mxu0 0
  %927 = vmatprep.subr.bf16.mxu0 0
  %928 = vmatpush1.bf16.msra.mxu0 0
  %929 = vmatprep.mubr.bf16.mxu0 0
  %930 = vmatmul.mubr.bf16.gmra.mrb[0].mxu0 %v851
  %v931 = vpop.f32.mrb[0].mxu0
  %v932 = vadd.f32 0.0, %v931
  %v933 = vpop.f32.mrb[0].mxu0
  %v934 = vpop.f32.mrb[0].mxu0
  %v935 = vpop.f32.mrb[0].mxu0
  %936 = vdwg.mxu0
  %v937 = vadd.f32 %v896, %v932
  %v938 = vtanh.pop %v937
  %v939 = vpack.c.bf16 %v938, %v938
  %v940 = vpack.c.bf16 %v894, %v894
  %v942 = vsel %vm156, %v940, 0
  %944 = vmatprep.subr.bf16.mxu0 0
  %945 = vmatpush1.bf16.msra.mxu0 %v249
  %946 = vmatprep.subr.bf16.mxu0 0
  %947 = vmatpush1.bf16.msra.mxu0 %v250
  %948 = vmatprep.subr.bf16.mxu0 0
  %949 = vmatpush1.bf16.msra.mxu0 0
  %950 = vmatprep.subr.bf16.mxu0 0
  %951 = vmatpush1.bf16.msra.mxu0 0
  %952 = vmatprep.subr.bf16.mxu0 0
  %953 = vmatpush1.bf16.msra.mxu0 0
  %954 = vmatprep.subr.bf16.mxu0 0
  %955 = vmatpush1.bf16.msra.mxu0 0
  %956 = vmatprep.subr.bf16.mxu0 0
  %957 = vmatpush1.bf16.msra.mxu0 0
  %958 = vmatprep.subr.bf16.mxu0 0
  %959 = vmatpush1.bf16.msra.mxu0 0
  %960 = vmatprep.subr.bf16.mxu0 0
  %961 = vmatpush1.bf16.msra.mxu0 0
  %962 = vmatprep.subr.bf16.mxu0 0
  %963 = vmatpush1.bf16.msra.mxu0 0
  %964 = vmatprep.subr.bf16.mxu0 0
  %965 = vmatpush1.bf16.msra.mxu0 0
  %966 = vmatprep.subr.bf16.mxu0 0
  %967 = vmatpush1.bf16.msra.mxu0 0
  %968 = vmatprep.subr.bf16.mxu0 0
  %969 = vmatpush1.bf16.msra.mxu0 0
  %970 = vmatprep.subr.bf16.mxu0 0
  %971 = vmatpush1.bf16.msra.mxu0 0
  %972 = vmatprep.subr.bf16.mxu0 0
  %973 = vmatpush1.bf16.msra.mxu0 0
  %974 = vmatprep.subr.bf16.mxu0 0
  %975 = vmatpush1.bf16.msra.mxu0 0
  %976 = vmatprep.mubr.bf16.mxu0 0
  %977 = vmatmul.mubr.bf16.gmra.mrb[0].mxu0 %v942
  %v978 = vpop.f32.mrb[0].mxu0
  %v979 = vadd.f32 0.0, %v978
  %v980 = vpop.f32.mrb[0].mxu0
  %v981 = vpop.f32.mrb[0].mxu0
  %v982 = vpop.f32.mrb[0].mxu0
  %983 = vdwg.mxu0
  %v985 = vsel %vm156, %v939, 0
  %987 = vmatprep.subr.bf16.mxu0 0
  %988 = vmatpush1.bf16.msra.mxu0 %v304
  %989 = vmatprep.subr.bf16.mxu0 0
  %990 = vmatpush1.bf16.msra.mxu0 %v305
  %991 = vmatprep.subr.bf16.mxu0 0
  %992 = vmatpush1.bf16.msra.mxu0 0
  %993 = vmatprep.subr.bf16.mxu0 0
  %994 = vmatpush1.bf16.msra.mxu0 0
  %995 = vmatprep.subr.bf16.mxu0 0
  %996 = vmatpush1.bf16.msra.mxu0 0
  %997 = vmatprep.subr.bf16.mxu0 0
  %998 = vmatpush1.bf16.msra.mxu0 0
  %999 = vmatprep.subr.bf16.mxu0 0
  %1000 = vmatpush1.bf16.msra.mxu0 0
  %1001 = vmatprep.subr.bf16.mxu0 0
  %1002 = vmatpush1.bf16.msra.mxu0 0
  %1003 = vmatprep.subr.bf16.mxu0 0
  %1004 = vmatpush1.bf16.msra.mxu0 0
  %1005 = vmatprep.subr.bf16.mxu0 0
  %1006 = vmatpush1.bf16.msra.mxu0 0
  %1007 = vmatprep.subr.bf16.mxu0 0
  %1008 = vmatpush1.bf16.msra.mxu0 0
  %1009 = vmatprep.subr.bf16.mxu0 0
  %1010 = vmatpush1.bf16.msra.mxu0 0
  %1011 = vmatprep.subr.bf16.mxu0 0
  %1012 = vmatpush1.bf16.msra.mxu0 0
  %1013 = vmatprep.subr.bf16.mxu0 0
  %1014 = vmatpush1.bf16.msra.mxu0 0
  %1015 = vmatprep.subr.bf16.mxu0 0
  %1016 = vmatpush1.bf16.msra.mxu0 0
  %1017 = vmatprep.subr.bf16.mxu0 0
  %1018 = vmatpush1.bf16.msra.mxu0 0
  %1019 = vmatprep.mubr.bf16.mxu0 0
  %1020 = vmatmul.mubr.bf16.gmra.mrb[0].mxu0 %v985
  %v1021 = vpop.f32.mrb[0].mxu0
  %v1022 = vadd.f32 %v979, %v1021
  %v1023 = vpop.f32.mrb[0].mxu0
  %v1024 = vpop.f32.mrb[0].mxu0
  %v1025 = vpop.f32.mrb[0].mxu0
  %1026 = vdwg.mxu0
  %v1027 = vadd.f32 %v1022, %v355
  %v1028 = vtanh.pop %v1027
  %s1029 = scalar_lea.vmem [#allocation2], 48
  %v1030 = vld [vmem:[%s1029] sm:$0xff]
  %1031 = vmatprep.subr.bf16.mxu0 0
  %1032 = vmatpush1.bf16.msra.mxu0 %v190
  %1033 = vmatprep.subr.bf16.mxu0 0
  %1034 = vmatpush1.bf16.msra.mxu0 %v191
  %1035 = vmatprep.subr.bf16.mxu0 0
  %1036 = vmatpush1.bf16.msra.mxu0 0
  %1037 = vmatprep.subr.bf16.mxu0 0
  %1038 = vmatpush1.bf16.msra.mxu0 0
  %1039 = vmatprep.subr.bf16.mxu0 0
  %1040 = vmatpush1.bf16.msra.mxu0 0
  %1041 = vmatprep.subr.bf16.mxu0 0
  %1042 = vmatpush1.bf16.msra.mxu0 0
  %1043 = vmatprep.subr.bf16.mxu0 0
  %1044 = vmatpush1.bf16.msra.mxu0 0
  %1045 = vmatprep.subr.bf16.mxu0 0
  %1046 = vmatpush1.bf16.msra.mxu0 0
  %1047 = vmatprep.subr.bf16.mxu0 0
  %1048 = vmatpush1.bf16.msra.mxu0 0
  %1049 = vmatprep.subr.bf16.mxu0 0
  %1050 = vmatpush1.bf16.msra.mxu0 0
  %1051 = vmatprep.subr.bf16.mxu0 0
  %1052 = vmatpush1.bf16.msra.mxu0 0
  %1053 = vmatprep.subr.bf16.mxu0 0
  %1054 = vmatpush1.bf16.msra.mxu0 0
  %1055 = vmatprep.subr.bf16.mxu0 0
  %1056 = vmatpush1.bf16.msra.mxu0 0
  %1057 = vmatprep.subr.bf16.mxu0 0
  %1058 = vmatpush1.bf16.msra.mxu0 0
  %1059 = vmatprep.subr.bf16.mxu0 0
  %1060 = vmatpush1.bf16.msra.mxu0 0
  %1061 = vmatprep.subr.bf16.mxu0 0
  %1062 = vmatpush1.bf16.msra.mxu0 0
  %1063 = vmatprep.mubr.bf16.mxu0 0
  %1064 = vmatmul.mubr.bf16.gmra.mrb[0].mxu0 %v985
  %v1065 = vpop.f32.mrb[0].mxu0
  %v1066 = vadd.f32 0.0, %v1065
  %v1067 = vpop.f32.mrb[0].mxu0
  %v1068 = vpop.f32.mrb[0].mxu0
  %v1069 = vpop.f32.mrb[0].mxu0
  %1070 = vdwg.mxu0
  %v1071 = vadd.f32 %v1030, %v1066
  %v1072 = vtanh.pop %v1071
  %v1073 = vpack.c.bf16 %v1072, %v1072
  %v1074 = vpack.c.bf16 %v1028, %v1028
  %v1076 = vsel %vm156, %v1074, 0
  %1078 = vmatprep.subr.bf16.mxu0 0
  %1079 = vmatpush1.bf16.msra.mxu0 %v249
  %1080 = vmatprep.subr.bf16.mxu0 0
  %1081 = vmatpush1.bf16.msra.mxu0 %v250
  %1082 = vmatprep.subr.bf16.mxu0 0
  %1083 = vmatpush1.bf16.msra.mxu0 0
  %1084 = vmatprep.subr.bf16.mxu0 0
  %1085 = vmatpush1.bf16.msra.mxu0 0
  %1086 = vmatprep.subr.bf16.mxu0 0
  %1087 = vmatpush1.bf16.msra.mxu0 0
  %1088 = vmatprep.subr.bf16.mxu0 0
  %1089 = vmatpush1.bf16.msra.mxu0 0
  %1090 = vmatprep.subr.bf16.mxu0 0
  %1091 = vmatpush1.bf16.msra.mxu0 0
  %1092 = vmatprep.subr.bf16.mxu0 0
  %1093 = vmatpush1.bf16.msra.mxu0 0
  %1094 = vmatprep.subr.bf16.mxu0 0
  %1095 = vmatpush1.bf16.msra.mxu0 0
  %1096 = vmatprep.subr.bf16.mxu0 0
  %1097 = vmatpush1.bf16.msra.mxu0 0
  %1098 = vmatprep.subr.bf16.mxu0 0
  %1099 = vmatpush1.bf16.msra.mxu0 0
  %1100 = vmatprep.subr.bf16.mxu0 0
  %1101 = vmatpush1.bf16.msra.mxu0 0
  %1102 = vmatprep.subr.bf16.mxu0 0
  %1103 = vmatpush1.bf16.msra.mxu0 0
  %1104 = vmatprep.subr.bf16.mxu0 0
  %1105 = vmatpush1.bf16.msra.mxu0 0
  %1106 = vmatprep.subr.bf16.mxu0 0
  %1107 = vmatpush1.bf16.msra.mxu0 0
  %1108 = vmatprep.subr.bf16.mxu0 0
  %1109 = vmatpush1.bf16.msra.mxu0 0
  %1110 = vmatprep.mubr.bf16.mxu0 0
  %1111 = vmatmul.mubr.bf16.gmra.mrb[0].mxu0 %v1076
  %v1112 = vpop.f32.mrb[0].mxu0
  %v1113 = vadd.f32 0.0, %v1112
  %v1114 = vpop.f32.mrb[0].mxu0
  %v1115 = vpop.f32.mrb[0].mxu0
  %v1116 = vpop.f32.mrb[0].mxu0
  %1117 = vdwg.mxu0
  %v1119 = vsel %vm156, %v1073, 0
  %1121 = vmatprep.subr.bf16.mxu0 0
  %1122 = vmatpush1.bf16.msra.mxu0 %v304
  %1123 = vmatprep.subr.bf16.mxu0 0
  %1124 = vmatpush1.bf16.msra.mxu0 %v305
  %1125 = vmatprep.subr.bf16.mxu0 0
  %1126 = vmatpush1.bf16.msra.mxu0 0
  %1127 = vmatprep.subr.bf16.mxu0 0
  %1128 = vmatpush1.bf16.msra.mxu0 0
  %1129 = vmatprep.subr.bf16.mxu0 0
  %1130 = vmatpush1.bf16.msra.mxu0 0
  %1131 = vmatprep.subr.bf16.mxu0 0
  %1132 = vmatpush1.bf16.msra.mxu0 0
  %1133 = vmatprep.subr.bf16.mxu0 0
  %1134 = vmatpush1.bf16.msra.mxu0 0
  %1135 = vmatprep.subr.bf16.mxu0 0
  %1136 = vmatpush1.bf16.msra.mxu0 0
  %1137 = vmatprep.subr.bf16.mxu0 0
  %1138 = vmatpush1.bf16.msra.mxu0 0
  %1139 = vmatprep.subr.bf16.mxu0 0
  %1140 = vmatpush1.bf16.msra.mxu0 0
  %1141 = vmatprep.subr.bf16.mxu0 0
  %1142 = vmatpush1.bf16.msra.mxu0 0
  %1143 = vmatprep.subr.bf16.mxu0 0
  %1144 = vmatpush1.bf16.msra.mxu0 0
  %1145 = vmatprep.subr.bf16.mxu0 0
  %1146 = vmatpush1.bf16.msra.mxu0 0
  %1147 = vmatprep.subr.bf16.mxu0 0
  %1148 = vmatpush1.bf16.msra.mxu0 0
  %1149 = vmatprep.subr.bf16.mxu0 0
  %1150 = vmatpush1.bf16.msra.mxu0 0
  %1151 = vmatprep.subr.bf16.mxu0 0
  %1152 = vmatpush1.bf16.msra.mxu0 0
  %1153 = vmatprep.mubr.bf16.mxu0 0
  %1154 = vmatmul.mubr.bf16.gmra.mrb[0].mxu0 %v1119
  %v1155 = vpop.f32.mrb[0].mxu0
  %v1156 = vadd.f32 %v1113, %v1155
  %v1157 = vpop.f32.mrb[0].mxu0
  %v1158 = vpop.f32.mrb[0].mxu0
  %v1159 = vpop.f32.mrb[0].mxu0
  %1160 = vdwg.mxu0
  %v1161 = vadd.f32 %v1156, %v355
  %v1162 = vtanh.pop %v1161
  %s1163 = scalar_lea.vmem [#allocation2], 56
  %v1164 = vld [vmem:[%s1163] sm:$0xff]
  %1165 = vmatprep.subr.bf16.mxu0 0
  %1166 = vmatpush1.bf16.msra.mxu0 %v190
  %1167 = vmatprep.subr.bf16.mxu0 0
  %1168 = vmatpush1.bf16.msra.mxu0 %v191
  %1169 = vmatprep.subr.bf16.mxu0 0
  %1170 = vmatpush1.bf16.msra.mxu0 0
  %1171 = vmatprep.subr.bf16.mxu0 0
  %1172 = vmatpush1.bf16.msra.mxu0 0
  %1173 = vmatprep.subr.bf16.mxu0 0
  %1174 = vmatpush1.bf16.msra.mxu0 0
  %1175 = vmatprep.subr.bf16.mxu0 0
  %1176 = vmatpush1.bf16.msra.mxu0 0
  %1177 = vmatprep.subr.bf16.mxu0 0
  %1178 = vmatpush1.bf16.msra.mxu0 0
  %1179 = vmatprep.subr.bf16.mxu0 0
  %1180 = vmatpush1.bf16.msra.mxu0 0
  %1181 = vmatprep.subr.bf16.mxu0 0
  %1182 = vmatpush1.bf16.msra.mxu0 0
  %1183 = vmatprep.subr.bf16.mxu0 0
  %1184 = vmatpush1.bf16.msra.mxu0 0
  %1185 = vmatprep.subr.bf16.mxu0 0
  %1186 = vmatpush1.bf16.msra.mxu0 0
  %1187 = vmatprep.subr.bf16.mxu0 0
  %1188 = vmatpush1.bf16.msra.mxu0 0
  %1189 = vmatprep.subr.bf16.mxu0 0
  %1190 = vmatpush1.bf16.msra.mxu0 0
  %1191 = vmatprep.subr.bf16.mxu0 0
  %1192 = vmatpush1.bf16.msra.mxu0 0
  %1193 = vmatprep.subr.bf16.mxu0 0
  %1194 = vmatpush1.bf16.msra.mxu0 0
  %1195 = vmatprep.subr.bf16.mxu0 0
  %1196 = vmatpush1.bf16.msra.mxu0 0
  %1197 = vmatprep.mubr.bf16.mxu0 0
  %1198 = vmatmul.mubr.bf16.gmra.mrb[0].mxu0 %v1119
  %v1199 = vpop.f32.mrb[0].mxu0
  %v1200 = vadd.f32 0.0, %v1199
  %v1201 = vpop.f32.mrb[0].mxu0
  %v1202 = vpop.f32.mrb[0].mxu0
  %v1203 = vpop.f32.mrb[0].mxu0
  %1204 = vdwg.mxu0
  %v1205 = vadd.f32 %v1164, %v1200
  %v1206 = vtanh.pop %v1205
  %v1207 = vpack.c.bf16 %v1206, %v1206
  %v1208 = vpack.c.bf16 %v1162, %v1162
  %v1210 = vsel %vm156, %v1208, 0
  %1212 = vmatprep.subr.bf16.mxu0 0
  %1213 = vmatpush1.bf16.msra.mxu0 %v249
  %1214 = vmatprep.subr.bf16.mxu0 0
  %1215 = vmatpush1.bf16.msra.mxu0 %v250
  %1216 = vmatprep.subr.bf16.mxu0 0
  %1217 = vmatpush1.bf16.msra.mxu0 0
  %1218 = vmatprep.subr.bf16.mxu0 0
  %1219 = vmatpush1.bf16.msra.mxu0 0
  %1220 = vmatprep.subr.bf16.mxu0 0
  %1221 = vmatpush1.bf16.msra.mxu0 0
  %1222 = vmatprep.subr.bf16.mxu0 0
  %1223 = vmatpush1.bf16.msra.mxu0 0
  %1224 = vmatprep.subr.bf16.mxu0 0
  %1225 = vmatpush1.bf16.msra.mxu0 0
  %1226 = vmatprep.subr.bf16.mxu0 0
  %1227 = vmatpush1.bf16.msra.mxu0 0
  %1228 = vmatprep.subr.bf16.mxu0 0
  %1229 = vmatpush1.bf16.msra.mxu0 0
  %1230 = vmatprep.subr.bf16.mxu0 0
  %1231 = vmatpush1.bf16.msra.mxu0 0
  %1232 = vmatprep.subr.bf16.mxu0 0
  %1233 = vmatpush1.bf16.msra.mxu0 0
  %1234 = vmatprep.subr.bf16.mxu0 0
  %1235 = vmatpush1.bf16.msra.mxu0 0
  %1236 = vmatprep.subr.bf16.mxu0 0
  %1237 = vmatpush1.bf16.msra.mxu0 0
  %1238 = vmatprep.subr.bf16.mxu0 0
  %1239 = vmatpush1.bf16.msra.mxu0 0
  %1240 = vmatprep.subr.bf16.mxu0 0
  %1241 = vmatpush1.bf16.msra.mxu0 0
  %1242 = vmatprep.subr.bf16.mxu0 0
  %1243 = vmatpush1.bf16.msra.mxu0 0
  %1244 = vmatprep.mubr.bf16.mxu0 0
  %1245 = vmatmul.mubr.bf16.gmra.mrb[0].mxu0 %v1210
  %v1246 = vpop.f32.mrb[0].mxu0
  %v1247 = vadd.f32 0.0, %v1246
  %v1248 = vpop.f32.mrb[0].mxu0
  %v1249 = vpop.f32.mrb[0].mxu0
  %v1250 = vpop.f32.mrb[0].mxu0
  %1251 = vdwg.mxu0
  %v1253 = vsel %vm156, %v1207, 0
  %1255 = vmatprep.subr.bf16.mxu0 0
  %1256 = vmatpush1.bf16.msra.mxu0 %v304
  %1257 = vmatprep.subr.bf16.mxu0 0
  %1258 = vmatpush1.bf16.msra.mxu0 %v305
  %1259 = vmatprep.subr.bf16.mxu0 0
  %1260 = vmatpush1.bf16.msra.mxu0 0
  %1261 = vmatprep.subr.bf16.mxu0 0
  %1262 = vmatpush1.bf16.msra.mxu0 0
  %1263 = vmatprep.subr.bf16.mxu0 0
  %1264 = vmatpush1.bf16.msra.mxu0 0
  %1265 = vmatprep.subr.bf16.mxu0 0
  %1266 = vmatpush1.bf16.msra.mxu0 0
  %1267 = vmatprep.subr.bf16.mxu0 0
  %1268 = vmatpush1.bf16.msra.mxu0 0
  %1269 = vmatprep.subr.bf16.mxu0 0
  %1270 = vmatpush1.bf16.msra.mxu0 0
  %1271 = vmatprep.subr.bf16.mxu0 0
  %1272 = vmatpush1.bf16.msra.mxu0 0
  %1273 = vmatprep.subr.bf16.mxu0 0
  %1274 = vmatpush1.bf16.msra.mxu0 0
  %1275 = vmatprep.subr.bf16.mxu0 0
  %1276 = vmatpush1.bf16.msra.mxu0 0
  %1277 = vmatprep.subr.bf16.mxu0 0
  %1278 = vmatpush1.bf16.msra.mxu0 0
  %1279 = vmatprep.subr.bf16.mxu0 0
  %1280 = vmatpush1.bf16.msra.mxu0 0
  %1281 = vmatprep.subr.bf16.mxu0 0
  %1282 = vmatpush1.bf16.msra.mxu0 0
  %1283 = vmatprep.subr.bf16.mxu0 0
  %1284 = vmatpush1.bf16.msra.mxu0 0
  %1285 = vmatprep.subr.bf16.mxu0 0
  %1286 = vmatpush1.bf16.msra.mxu0 0
  %1287 = vmatprep.mubr.bf16.mxu0 0
  %1288 = vmatmul.mubr.bf16.gmra.mrb[0].mxu0 %v1253
  %v1289 = vpop.f32.mrb[0].mxu0
  %v1290 = vadd.f32 %v1247, %v1289
  %v1291 = vpop.f32.mrb[0].mxu0
  %v1292 = vpop.f32.mrb[0].mxu0
  %v1293 = vpop.f32.mrb[0].mxu0
  %1294 = vdwg.mxu0
  %v1295 = vadd.f32 %v1290, %v355
  %v1296 = vtanh.pop %v1295
  %v1297 = vld [vmem:[%s9] sm:$0xf]
  %v1298 = vld [vmem:[%s9 + $0x4] sm:$0xf]
  %v1299 = vld [vmem:[%s9 + $0x8] sm:$0xf]
  %v1300 = vld [vmem:[%s9 + $0xc] sm:$0xf]
  %v1301 = vld [vmem:[%s10] sm:$0x1]
  %v1302 = vpack.c.bf16 %v1296, %v1296
  %v1304 = vlaneseq
  %v1305 = vshrl.u32 %v1304, 7
  %v1306 = vsub.s32 0, %v1305
  %v1307 = vrot.slane %v1301, %v1306
  %v1313 = vunpack.c.l.b16 %v1297
  %v1314 = vunpack.c.l.b16 %v1298
  %v1315 = vunpack.c.l.b16 %v1299
  %v1316 = vunpack.c.l.b16 %v1300
  %v1317 = vpack.c.b16 %v1314, %v1313
  %v1318 = vpack.c.b16 %v1316, %v1315
  %v1322 = vsel %vm156, %v1302, 0
  %1324 = vmatprep.subr.bf16.mxu0 0
  %1325 = vmatpush1.bf16.msra.mxu0 %v1317
  %1326 = vmatprep.subr.bf16.mxu0 0
  %1327 = vmatpush1.bf16.msra.mxu0 %v1318
  %1328 = vmatprep.subr.bf16.mxu0 0
  %1329 = vmatpush1.bf16.msra.mxu0 0
  %1330 = vmatprep.subr.bf16.mxu0 0
  %1331 = vmatpush1.bf16.msra.mxu0 0
  %1332 = vmatprep.subr.bf16.mxu0 0
  %1333 = vmatpush1.bf16.msra.mxu0 0
  %1334 = vmatprep.subr.bf16.mxu0 0
  %1335 = vmatpush1.bf16.msra.mxu0 0
  %1336 = vmatprep.subr.bf16.mxu0 0
  %1337 = vmatpush1.bf16.msra.mxu0 0
  %1338 = vmatprep.subr.bf16.mxu0 0
  %1339 = vmatpush1.bf16.msra.mxu0 0
  %1340 = vmatprep.subr.bf16.mxu0 0
  %1341 = vmatpush1.bf16.msra.mxu0 0
  %1342 = vmatprep.subr.bf16.mxu0 0
  %1343 = vmatpush1.bf16.msra.mxu0 0
  %1344 = vmatprep.subr.bf16.mxu0 0
  %1345 = vmatpush1.bf16.msra.mxu0 0
  %1346 = vmatprep.subr.bf16.mxu0 0
  %1347 = vmatpush1.bf16.msra.mxu0 0
  %1348 = vmatprep.subr.bf16.mxu0 0
  %1349 = vmatpush1.bf16.msra.mxu0 0
  %1350 = vmatprep.subr.bf16.mxu0 0
  %1351 = vmatpush1.bf16.msra.mxu0 0
  %1352 = vmatprep.subr.bf16.mxu0 0
  %1353 = vmatpush1.bf16.msra.mxu0 0
  %1354 = vmatprep.subr.bf16.mxu0 0
  %1355 = vmatpush1.bf16.msra.mxu0 0
  %1356 = vmatprep.mubr.bf16.mxu0 0
  %1357 = vmatmul.mubr.bf16.gmra.mrb[0].mxu0 %v1322
  %v1358 = vpop.f32.mrb[0].mxu0
  %v1359 = vadd.f32 %v1307, %v1358
  %v1360 = vpop.f32.mrb[0].mxu0
  %v1361 = vpop.f32.mrb[0].mxu0
  %v1362 = vpop.f32.mrb[0].mxu0
  %1363 = vdwg.mxu0
  %v1364 = vmax.f32 %v1359, 0.0
  %v1365 = vld [vmem:[%s11] sm:$0xf]
  %v1366 = vld [vmem:[%s11 + $0x4] sm:$0xf]
  %v1367 = vld [vmem:[%s11 + $0x8] sm:$0xf]
  %v1368 = vld [vmem:[%s11 + $0xc] sm:$0xf]
  %v1369 = vld [vmem:[%s11 + $0x10] sm:$0xf]
  %v1370 = vld [vmem:[%s11 + $0x14] sm:$0xf]
  %v1371 = vld [vmem:[%s11 + $0x18] sm:$0xf]
  %v1372 = vld [vmem:[%s11 + $0x1c] sm:$0xf]
  %v1373 = vld [vmem:[%s12] sm:$0x1]
  %v1374 = vpack.c.bf16 %v1364, %v1364
  %v1376 = vlaneseq
  %v1377 = vshrl.u32 %v1376, 7
  %v1378 = vsub.s32 0, %v1377
  %v1379 = vrot.slane %v1373, %v1378
  %v1389 = vunpack.c.l.b16 %v1365
  %v1390 = vunpack.c.l.b16 %v1366
  %v1391 = vunpack.c.l.b16 %v1367
  %v1392 = vunpack.c.l.b16 %v1368
  %v1393 = vunpack.c.l.b16 %v1369
  %v1394 = vunpack.c.l.b16 %v1370
  %v1395 = vunpack.c.l.b16 %v1371
  %v1396 = vunpack.c.l.b16 %v1372
  %v1397 = vpack.c.b16 %v1390, %v1389
  %v1398 = vpack.c.b16 %v1392, %v1391
  %v1399 = vpack.c.b16 %v1394, %v1393
  %v1400 = vpack.c.b16 %v1396, %v1395
  %vm1405 = vcmask 523264
  %v1407 = vsel %vm1405, %v1374, 0
  %1409 = vmatprep.subr.bf16.mxu0 0
  %1410 = vmatpush1.bf16.msra.mxu0 %v1397
  %1411 = vmatprep.subr.bf16.mxu0 0
  %1412 = vmatpush1.bf16.msra.mxu0 %v1398
  %1413 = vmatprep.subr.bf16.mxu0 0
  %1414 = vmatpush1.bf16.msra.mxu0 %v1399
  %1415 = vmatprep.subr.bf16.mxu0 0
  %1416 = vmatpush1.bf16.msra.mxu0 %v1400
  %1417 = vmatprep.subr.bf16.mxu0 0
  %1418 = vmatpush1.bf16.msra.mxu0 0
  %1419 = vmatprep.subr.bf16.mxu0 0
  %1420 = vmatpush1.bf16.msra.mxu0 0
  %1421 = vmatprep.subr.bf16.mxu0 0
  %1422 = vmatpush1.bf16.msra.mxu0 0
  %1423 = vmatprep.subr.bf16.mxu0 0
  %1424 = vmatpush1.bf16.msra.mxu0 0
  %1425 = vmatprep.subr.bf16.mxu0 0
  %1426 = vmatpush1.bf16.msra.mxu0 0
  %1427 = vmatprep.subr.bf16.mxu0 0
  %1428 = vmatpush1.bf16.msra.mxu0 0
  %1429 = vmatprep.subr.bf16.mxu0 0
  %1430 = vmatpush1.bf16.msra.mxu0 0
  %1431 = vmatprep.subr.bf16.mxu0 0
  %1432 = vmatpush1.bf16.msra.mxu0 0
  %1433 = vmatprep.subr.bf16.mxu0 0
  %1434 = vmatpush1.bf16.msra.mxu0 0
  %1435 = vmatprep.subr.bf16.mxu0 0
  %1436 = vmatpush1.bf16.msra.mxu0 0
  %1437 = vmatprep.subr.bf16.mxu0 0
  %1438 = vmatpush1.bf16.msra.mxu0 0
  %1439 = vmatprep.subr.bf16.mxu0 0
  %1440 = vmatpush1.bf16.msra.mxu0 0
  %1441 = vmatprep.mubr.bf16.mxu0 0
  %1442 = vmatmul.mubr.bf16.gmra.mrb[0].mxu0 %v1407
  %v1443 = vpop.f32.mrb[0].mxu0
  %v1444 = vadd.f32 %v1379, %v1443
  %v1445 = vpop.f32.mrb[0].mxu0
  %v1446 = vpop.f32.mrb[0].mxu0
  %v1447 = vpop.f32.mrb[0].mxu0
  %1448 = vdwg.mxu0
  %v1449 = vmax.f32 %v1444, 0.0
  %v1450 = vpack.c.bf16 %v1449, %v1449
  %v1451 = vld [vmem:[%s13] sm:$0xf]
  %v1452 = vld [vmem:[%s13 + $0x4] sm:$0xf]
  %v1453 = vld [vmem:[%s13 + $0x8] sm:$0xf]
  %v1454 = vld [vmem:[%s13 + $0xc] sm:$0xf]
  %v1455 = vld [vmem:[%s14] sm:$0x1]
  %v1457 = vlaneseq
  %v1458 = vshrl.u32 %v1457, 7
  %v1459 = vsub.s32 0, %v1458
  %v1460 = vrot.slane %v1455, %v1459
  %v1466 = vunpack.c.l.b16 %v1451
  %v1467 = vunpack.c.l.b16 %v1452
  %v1468 = vunpack.c.l.b16 %v1453
  %v1469 = vunpack.c.l.b16 %v1454
  %v1470 = vpack.c.b16 %v1467, %v1466
  %v1471 = vpack.c.b16 %v1469, %v1468
  %v1475 = vsel %vm156, %v1450, 0
  %1477 = vmatprep.subr.bf16.mxu0 0
  %1478 = vmatpush1.bf16.msra.mxu0 %v1470
  %1479 = vmatprep.subr.bf16.mxu0 0
  %1480 = vmatpush1.bf16.msra.mxu0 %v1471
  %1481 = vmatprep.subr.bf16.mxu0 0
  %1482 = vmatpush1.bf16.msra.mxu0 0
  %1483 = vmatprep.subr.bf16.mxu0 0
  %1484 = vmatpush1.bf16.msra.mxu0 0
  %1485 = vmatprep.subr.bf16.mxu0 0
  %1486 = vmatpush1.bf16.msra.mxu0 0
  %1487 = vmatprep.subr.bf16.mxu0 0
  %1488 = vmatpush1.bf16.msra.mxu0 0
  %1489 = vmatprep.subr.bf16.mxu0 0
  %1490 = vmatpush1.bf16.msra.mxu0 0
  %1491 = vmatprep.subr.bf16.mxu0 0
  %1492 = vmatpush1.bf16.msra.mxu0 0
  %1493 = vmatprep.subr.bf16.mxu0 0
  %1494 = vmatpush1.bf16.msra.mxu0 0
  %1495 = vmatprep.subr.bf16.mxu0 0
  %1496 = vmatpush1.bf16.msra.mxu0 0
  %1497 = vmatprep.subr.bf16.mxu0 0
  %1498 = vmatpush1.bf16.msra.mxu0 0
  %1499 = vmatprep.subr.bf16.mxu0 0
  %1500 = vmatpush1.bf16.msra.mxu0 0
  %1501 = vmatprep.subr.bf16.mxu0 0
  %1502 = vmatpush1.bf16.msra.mxu0 0
  %1503 = vmatprep.subr.bf16.mxu0 0
  %1504 = vmatpush1.bf16.msra.mxu0 0
  %1505 = vmatprep.subr.bf16.mxu0 0
  %1506 = vmatpush1.bf16.msra.mxu0 0
  %1507 = vmatprep.subr.bf16.mxu0 0
  %1508 = vmatpush1.bf16.msra.mxu0 0
  %1509 = vmatprep.mubr.bf16.mxu0 0
  %1510 = vmatmul.mubr.bf16.gmra.mrb[0].mxu0 %v1475
  %v1511 = vpop.f32.mrb[0].mxu0
  %v1512 = vadd.f32 %v1460, %v1511
  %v1513 = vpop.f32.mrb[0].mxu0
  %v1514 = vpop.f32.mrb[0].mxu0
  %v1515 = vpop.f32.mrb[0].mxu0
  %1516 = vdwg.mxu0
  %1518 = vrot.lane.b32.xlu0 %v1296, 32
  %v1519 = vpop.permute.xlu0 %1518
  %1522 = vrot.lane.b32.xlu0 %v1512, 64
  %v1523 = vpop.permute.xlu0 %1522
  %v1525 = vsel %vm156, %v1206, %v1519
  %v1526 = vsel %vm1405, %v1525, %v1523
  %vm1527 = vcmask 556032
  %v1528 = vsel %vm1527, %v1526, 0.0
  %1529 = vst [vmem:[%s15] sm:$0xff] %v1528
  // Predicated region
  $region62: #{dqn_forward.1} parent=0 // pred_check
    _
  $region63: #{dqn_forward.1} parent=0 // pred_check_branch
    %1531 = sbr.rel (0) target = $region65
  $region64: #{dqn_forward.1} parent=0 // pred_region
    _
  $region65: #{dqn_forward.1} parent=0 // pred_fallthru
    _
  // Predicated region
  $region66: #{dqn_forward.1} parent=0 // pred_check
    _
  $region67: #{dqn_forward.1} parent=0 // pred_check_branch
    %1533 = sbr.rel (0) target = $region69
  $region68: #{dqn_forward.1} parent=0 // pred_region
    _
  $region69: #{dqn_forward.1} parent=0 // pred_fallthru
    _

</llo_original>
